<compile_context>
chip_gen: v6e
topology: v6e:2x2x1
jax: 0.10.0
libtpu: 0.0.40
codegen_flags: <defaults>
</compile_context>

<pallas_src>
import functools

import jax
import jax.numpy as jnp
import numpy as np
from jax.experimental import pallas as pl
from jax.experimental.pallas import tpu as pltpu


def _layernorm(x, gamma, beta, eps):
    """LayerNorm over the last dim (f32), gamma/beta are (1, E)."""
    mu = jnp.mean(x, axis=-1, keepdims=True)
    xc = x - mu
    var = jnp.mean(xc * xc, axis=-1, keepdims=True)
    return xc * jax.lax.rsqrt(var + eps) * gamma + beta


def _encoder_block_kernel(x_ref, g1_ref, b1_ref, wq_ref, wk_ref, wv_ref,
                          wo_ref, bo_ref, g2_ref, b2_ref,
                          w1_ref, bm1_ref, w2_ref, bm2_ref, out_ref,
                          *, num_heads, head_dim, eps):
    """One grid step = one batch element; whole encoder block computed in VMEM."""
    f32 = jnp.float32
    bf16 = jnp.bfloat16
    scale = float(head_dim) ** (-0.5)

    x = x_ref[0]                                                  # (N, E) f32

    # ---------- LayerNorm (pre-attention) ----------
    xn = _layernorm(x, g1_ref[...], b1_ref[...], eps)             # (N, E) f32

    # ---------- fused Q/K/V projections over all heads (contraction = E) ----------
    xn_b = xn.astype(bf16)
    q = jnp.dot(xn_b, wq_ref[...].astype(bf16), preferred_element_type=f32)  # (N, inner)
    k = jnp.dot(xn_b, wk_ref[...].astype(bf16), preferred_element_type=f32)
    v = jnp.dot(xn_b, wv_ref[...].astype(bf16), preferred_element_type=f32)

    # ---------- per-head scaled dot-product attention (statically unrolled) ----------
    # TODO(synk): attention_masks caching (get_attention_masks) and the optional causal
    # mask are not materialized; only the mask=None inference path is implemented.
    head_outs = []
    for h in range(num_heads):
        sl = slice(h * head_dim, (h + 1) * head_dim)
        qh = q[:, sl].astype(bf16)                                # (N, hd)
        kh = k[:, sl].astype(bf16)
        vh = v[:, sl].astype(bf16)
        # q @ k^T without materializing a transpose: contract last dims of both.
        dots = jax.lax.dot_general(
            qh, kh, (((1,), (1,)), ((), ())),
            preferred_element_type=f32) * scale                   # (N, N) f32
        dots = dots - jnp.max(dots, axis=-1, keepdims=True)
        ex = jnp.exp(dots)
        inv = pl.reciprocal(jnp.sum(ex, axis=-1, keepdims=True), approx=True)
        p = (ex * inv).astype(bf16)                               # softmax(dim=-1)
        head_outs.append(jnp.dot(p, vh, preferred_element_type=f32))  # (N, hd) f32

    # merge_heads: head h occupies columns [h*hd, (h+1)*hd) -> concat along lanes,
    # then ONE (N, inner) @ (inner, E) output projection.
    merged = jnp.concatenate(head_outs, axis=-1)                  # (N, inner) f32
    attn = jnp.dot(merged.astype(bf16), wo_ref[...].astype(bf16),
                   preferred_element_type=f32) + bo_ref[...]      # (N, E) f32

    y = attn + x                                                  # residual 1

    # ---------- LayerNorm (pre-MLP) + MLP ----------
    yn = _layernorm(y, g2_ref[...], b2_ref[...], eps)
    h1 = jnp.dot(yn.astype(bf16), w1_ref[...].astype(bf16),
                 preferred_element_type=f32) + bm1_ref[...]       # (N, M)
    # TODO(synk): MLP class is not in the provided source; assumed Linear -> GELU -> Linear.
    h1 = jax.nn.gelu(h1, approximate=True)
    z = jnp.dot(h1.astype(bf16), w2_ref[...].astype(bf16),
                preferred_element_type=f32) + bm2_ref[...]        # (N, E)

    out_ref[0] = (z + y).astype(out_ref.dtype)                    # residual 2


def transformer_encoder_block(x, params, *, num_heads, head_dim, eps=1e-6):
    """Pallas implementation of TransformerEncoderBlock.forward (inference, mask=None).

    params (all (in, out) layout = torch weight.T):
      ln1_g, ln1_b : (1, E)               ln_att gamma/beta
      wq, wk, wv   : (E, inner)           no-bias projections (self-attention: kv_dim = E)
      wo           : (inner, E)           out_proj Linear weight.T (identity if no projection)
      bo           : (1, E)               out_proj bias (zeros if no projection)
      ln2_g, ln2_b : (1, E)               ln_mlp gamma/beta
      w1, b1       : (E, M), (1, M)       MLP first Linear
      w2, b2       : (M, E), (1, E)       MLP second Linear
    """
    B, N, E = x.shape
    inner = num_heads * head_dim
    M = params["w1"].shape[1]

    kernel = functools.partial(_encoder_block_kernel,
                               num_heads=num_heads, head_dim=head_dim, eps=eps)
    bcast = lambda b: (0, 0)          # weights/params: same full block every grid step

    return pl.pallas_call(
        kernel,
        out_shape=jax.ShapeDtypeStruct((B, N, E), jnp.float32),
        grid_spec=pltpu.PrefetchScalarGridSpec(
            num_scalar_prefetch=0,
            grid=(B,),
            in_specs=[
                pl.BlockSpec((1, N, E), lambda b: (b, 0, 0)),     # x
                pl.BlockSpec((1, E), bcast),                      # ln1 gamma
                pl.BlockSpec((1, E), bcast),                      # ln1 beta
                pl.BlockSpec((E, inner), bcast),                  # Wq
                pl.BlockSpec((E, inner), bcast),                  # Wk
                pl.BlockSpec((E, inner), bcast),                  # Wv
                pl.BlockSpec((inner, E), bcast),                  # Wo
                pl.BlockSpec((1, E), bcast),                      # bo
                pl.BlockSpec((1, E), bcast),                      # ln2 gamma
                pl.BlockSpec((1, E), bcast),                      # ln2 beta
                pl.BlockSpec((E, M), bcast),                      # W1
                pl.BlockSpec((1, M), bcast),                      # b1
                pl.BlockSpec((M, E), bcast),                      # W2
                pl.BlockSpec((1, E), bcast),                      # b2
            ],
            out_specs=pl.BlockSpec((1, N, E), lambda b: (b, 0, 0)),
        ),
        compiler_params=pltpu.CompilerParams(
            dimension_semantics=("parallel",),                    # batch shards across TCs
        ),
    )(x, params["ln1_g"], params["ln1_b"], params["wq"], params["wk"], params["wv"],
      params["wo"], params["bo"], params["ln2_g"], params["ln2_b"],
      params["w1"], params["b1"], params["w2"], params["b2"])


def reference_jax(x, params, *, num_heads, head_dim, eps=1e-6):
    """Plain-JAX mirror of the PyTorch module's forward (same bf16-operand matmuls)."""
    f32 = jnp.float32
    bf16 = jnp.bfloat16

    def ln(t, g, b):
        mu = jnp.mean(t, axis=-1, keepdims=True)
        var = jnp.mean((t - mu) ** 2, axis=-1, keepdims=True)
        return (t - mu) * jax.lax.rsqrt(var + eps) * g + b

    def mm(a, w):
        return jnp.dot(a.astype(bf16), w.astype(bf16), preferred_element_type=f32)

    B, N, E = x.shape
    H, hd = num_heads, head_dim
    scale = float(hd) ** (-0.5)

    xn = ln(x, params["ln1_g"], params["ln1_b"])
    q, k, v = mm(xn, params["wq"]), mm(xn, params["wk"]), mm(xn, params["wv"])

    def split(t):                                                  # (B, H, N, hd)
        return t.reshape(B, N, H, hd).transpose(0, 2, 1, 3)

    qh, kh, vh = split(q), split(k), split(v)
    dots = jnp.einsum("bhid,bhjd->bhij", qh.astype(bf16), kh.astype(bf16),
                      preferred_element_type=f32) * scale
    p = jax.nn.softmax(dots, axis=-1)
    o = jnp.einsum("bhij,bhjd->bhid", p.astype(bf16), vh.astype(bf16),
                   preferred_element_type=f32)
    o = o.transpose(0, 2, 1, 3).reshape(B, N, H * hd)              # merge_heads
    attn = mm(o, params["wo"]) + params["bo"]
    y = attn + x

    yn = ln(y, params["ln2_g"], params["ln2_b"])
    h1 = jax.nn.gelu(mm(yn, params["w1"]) + params["b1"], approximate=True)
    z = mm(h1, params["w2"]) + params["b2"]
    return z + y


if __name__ == "__main__":
    # Small but lane-dense shapes. inner_dim = num_heads * head_dim = 128 == embed_dim,
    # and we take project_out=True so the module's out_proj Linear path is active.
    # (If project_out=False and inner==emb, torch uses nn.Identity(): reproduce with
    #  wo = eye(inner), bo = zeros.)
    B, N = 2, 16
    embed_dim, head_dim, num_heads, mlp_size = 128, 32, 4, 256
    inner_dim = num_heads * head_dim

    key = jax.random.PRNGKey(0)
    ks = jax.random.split(key, 14)
    x = jax.random.normal(ks[0], (B, N, embed_dim), jnp.float32)

    params = {
        "ln1_g": 1.0 + 0.1 * jax.random.normal(ks[1], (1, embed_dim), jnp.float32),
        "ln1_b": 0.1 * jax.random.normal(ks[2], (1, embed_dim), jnp.float32),
        "wq": 0.1 * jax.random.normal(ks[3], (embed_dim, inner_dim), jnp.float32),
        "wk": 0.1 * jax.random.normal(ks[4], (embed_dim, inner_dim), jnp.float32),
        "wv": 0.1 * jax.random.normal(ks[5], (embed_dim, inner_dim), jnp.float32),
        "wo": 0.1 * jax.random.normal(ks[6], (inner_dim, embed_dim), jnp.float32),
        "bo": 0.1 * jax.random.normal(ks[7], (1, embed_dim), jnp.float32),
        "ln2_g": 1.0 + 0.1 * jax.random.normal(ks[8], (1, embed_dim), jnp.float32),
        "ln2_b": 0.1 * jax.random.normal(ks[9], (1, embed_dim), jnp.float32),
        "w1": 0.1 * jax.random.normal(ks[10], (embed_dim, mlp_size), jnp.float32),
        "b1": 0.1 * jax.random.normal(ks[11], (1, mlp_size), jnp.float32),
        "w2": 0.1 * jax.random.normal(ks[12], (mlp_size, embed_dim), jnp.float32),
        "b2": 0.1 * jax.random.normal(ks[13], (1, embed_dim), jnp.float32),
    }

    out = transformer_encoder_block(x, params, num_heads=num_heads, head_dim=head_dim)
    out = jax.block_until_ready(out)

    ref = reference_jax(x, params, num_heads=num_heads, head_dim=head_dim)
    ref = jax.block_until_ready(ref)

    # bf16 MXU operands + approximate EUP reciprocal in the kernel -> modest tolerance.
    np.testing.assert_allclose(np.asarray(out), np.asarray(ref), rtol=2e-2, atol=2e-2)
    print("KERNEL_OK")
</pallas_src>

<mosaic_0001>
module attributes {stable_mosaic.version = 11 : i64} {
  func.func @_encoder_block_kernel(%arg0: i32, %arg1: memref<1x16x128xf32, #tpu.memory_space<vmem>>, %arg2: memref<1x128xf32, #tpu.memory_space<vmem>>, %arg3: memref<1x128xf32, #tpu.memory_space<vmem>>, %arg4: memref<128x128xf32, #tpu.memory_space<vmem>>, %arg5: memref<128x128xf32, #tpu.memory_space<vmem>>, %arg6: memref<128x128xf32, #tpu.memory_space<vmem>>, %arg7: memref<128x128xf32, #tpu.memory_space<vmem>>, %arg8: memref<1x128xf32, #tpu.memory_space<vmem>>, %arg9: memref<1x128xf32, #tpu.memory_space<vmem>>, %arg10: memref<1x128xf32, #tpu.memory_space<vmem>>, %arg11: memref<128x256xf32, #tpu.memory_space<vmem>>, %arg12: memref<1x256xf32, #tpu.memory_space<vmem>>, %arg13: memref<256x128xf32, #tpu.memory_space<vmem>>, %arg14: memref<1x128xf32, #tpu.memory_space<vmem>>, %arg15: memref<1x16x128xf32, #tpu.memory_space<vmem>>) attributes {dimension_semantics = [#tpu.dimension_semantics<parallel>], iteration_bounds = array<i64: 2>, scalar_prefetch = 0 : i64, scratch_operands = 0 : i64, tpu.core_type = #tpu.core_type<tc>, window_params = [{transform_indices = @transform_0, window_bounds = array<i64: 1, 16, 128>}, {pipeline_mode = #tpu.pipeline_mode<synchronous>, transform_indices = @transform_1, window_bounds = array<i64: 1, 128>}, {pipeline_mode = #tpu.pipeline_mode<synchronous>, transform_indices = @transform_2, window_bounds = array<i64: 1, 128>}, {pipeline_mode = #tpu.pipeline_mode<synchronous>, transform_indices = @transform_3, window_bounds = array<i64: 128, 128>}, {pipeline_mode = #tpu.pipeline_mode<synchronous>, transform_indices = @transform_4, window_bounds = array<i64: 128, 128>}, {pipeline_mode = #tpu.pipeline_mode<synchronous>, transform_indices = @transform_5, window_bounds = array<i64: 128, 128>}, {pipeline_mode = #tpu.pipeline_mode<synchronous>, transform_indices = @transform_6, window_bounds = array<i64: 128, 128>}, {pipeline_mode = #tpu.pipeline_mode<synchronous>, transform_indices = @transform_7, window_bounds = array<i64: 1, 128>}, {pipeline_mode = #tpu.pipeline_mode<synchronous>, transform_indices = @transform_8, window_bounds = array<i64: 1, 128>}, {pipeline_mode = #tpu.pipeline_mode<synchronous>, transform_indices = @transform_9, window_bounds = array<i64: 1, 128>}, {pipeline_mode = #tpu.pipeline_mode<synchronous>, transform_indices = @transform_10, window_bounds = array<i64: 128, 256>}, {pipeline_mode = #tpu.pipeline_mode<synchronous>, transform_indices = @transform_11, window_bounds = array<i64: 1, 256>}, {pipeline_mode = #tpu.pipeline_mode<synchronous>, transform_indices = @transform_12, window_bounds = array<i64: 256, 128>}, {pipeline_mode = #tpu.pipeline_mode<synchronous>, transform_indices = @transform_13, window_bounds = array<i64: 1, 128>}, {transform_indices = @transform_14, window_bounds = array<i64: 1, 16, 128>}]} {
    %c0 = arith.constant 0 : index
    %c0_0 = arith.constant 0 : index
    %c0_1 = arith.constant 0 : index
    %0 = vector.load %arg1[%c0, %c0_0, %c0_1] : memref<1x16x128xf32, #tpu.memory_space<vmem>>, vector<1x16x128xf32>
    %1 = vector.shape_cast %0 : vector<1x16x128xf32> to vector<16x128xf32>
    %c0_2 = arith.constant 0 : index
    %c0_3 = arith.constant 0 : index
    %2 = vector.load %arg2[%c0_2, %c0_3] : memref<1x128xf32, #tpu.memory_space<vmem>>, vector<1x128xf32>
    %c0_4 = arith.constant 0 : index
    %c0_5 = arith.constant 0 : index
    %3 = vector.load %arg3[%c0_4, %c0_5] : memref<1x128xf32, #tpu.memory_space<vmem>>, vector<1x128xf32>
    %cst = arith.constant dense<0.000000e+00> : vector<16xf32>
    %4 = vector.multi_reduction <add>, %1, %cst [1] : vector<16x128xf32> to vector<16xf32>
    %5 = vector.shape_cast %4 : vector<16xf32> to vector<16x1xf32>
    %cst_6 = arith.constant 1.280000e+02 : f32
    %6 = vector.broadcast %cst_6 : f32 to vector<16x1xf32>
    %7 = arith.divf %5, %6 : vector<16x1xf32>
    %8 = vector.broadcast %7 : vector<16x1xf32> to vector<16x128xf32>
    %9 = arith.subf %1, %8 : vector<16x128xf32>
    %10 = arith.mulf %9, %9 : vector<16x128xf32>
    %cst_7 = arith.constant dense<0.000000e+00> : vector<16xf32>
    %11 = vector.multi_reduction <add>, %10, %cst_7 [1] : vector<16x128xf32> to vector<16xf32>
    %12 = vector.shape_cast %11 : vector<16xf32> to vector<16x1xf32>
    %cst_8 = arith.constant 1.280000e+02 : f32
    %13 = vector.broadcast %cst_8 : f32 to vector<16x1xf32>
    %14 = arith.divf %12, %13 : vector<16x1xf32>
    %cst_9 = arith.constant 9.99999997E-7 : f32
    %15 = vector.broadcast %cst_9 : f32 to vector<16x1xf32>
    %16 = arith.addf %14, %15 : vector<16x1xf32>
    %17 = math.rsqrt %16 : vector<16x1xf32>
    %18 = vector.broadcast %17 : vector<16x1xf32> to vector<16x128xf32>
    %19 = arith.mulf %9, %18 : vector<16x128xf32>
    %20 = vector.broadcast %2 : vector<1x128xf32> to vector<16x128xf32>
    %21 = arith.mulf %19, %20 : vector<16x128xf32>
    %22 = vector.broadcast %3 : vector<1x128xf32> to vector<16x128xf32>
    %23 = arith.addf %21, %22 : vector<16x128xf32>
    %24 = arith.truncf %23 : vector<16x128xf32> to vector<16x128xbf16>
    %c0_10 = arith.constant 0 : index
    %c0_11 = arith.constant 0 : index
    %25 = vector.load %arg4[%c0_10, %c0_11] : memref<128x128xf32, #tpu.memory_space<vmem>>, vector<128x128xf32>
    %26 = arith.truncf %25 : vector<128x128xf32> to vector<128x128xbf16>
    %cst_12 = arith.constant dense<0.000000e+00> : vector<16x128xf32>
    %27 = tpu.matmul %24, %26, %cst_12 {dimension_numbers = #tpu.dot_dimension_numbers<[1], [0], [0], [1], [0, 0, 1, 1], [], []>} : vector<16x128xbf16>, vector<128x128xbf16>, vector<16x128xf32> -> vector<16x128xf32>
    %c0_13 = arith.constant 0 : index
    %c0_14 = arith.constant 0 : index
    %28 = vector.load %arg5[%c0_13, %c0_14] : memref<128x128xf32, #tpu.memory_space<vmem>>, vector<128x128xf32>
    %29 = arith.truncf %28 : vector<128x128xf32> to vector<128x128xbf16>
    %cst_15 = arith.constant dense<0.000000e+00> : vector<16x128xf32>
    %30 = tpu.matmul %24, %29, %cst_15 {dimension_numbers = #tpu.dot_dimension_numbers<[1], [0], [0], [1], [0, 0, 1, 1], [], []>} : vector<16x128xbf16>, vector<128x128xbf16>, vector<16x128xf32> -> vector<16x128xf32>
    %c0_16 = arith.constant 0 : index
    %c0_17 = arith.constant 0 : index
    %31 = vector.load %arg6[%c0_16, %c0_17] : memref<128x128xf32, #tpu.memory_space<vmem>>, vector<128x128xf32>
    %32 = arith.truncf %31 : vector<128x128xf32> to vector<128x128xbf16>
    %cst_18 = arith.constant dense<0.000000e+00> : vector<16x128xf32>
    %33 = tpu.matmul %24, %32, %cst_18 {dimension_numbers = #tpu.dot_dimension_numbers<[1], [0], [0], [1], [0, 0, 1, 1], [], []>} : vector<16x128xbf16>, vector<128x128xbf16>, vector<16x128xf32> -> vector<16x128xf32>
    %34 = vector.extract_strided_slice %27 {offsets = [0, 0], sizes = [16, 32], strides = [1, 1]} : vector<16x128xf32> to vector<16x32xf32>
    %35 = arith.truncf %34 : vector<16x32xf32> to vector<16x32xbf16>
    %36 = vector.extract_strided_slice %30 {offsets = [0, 0], sizes = [16, 32], strides = [1, 1]} : vector<16x128xf32> to vector<16x32xf32>
    %37 = arith.truncf %36 : vector<16x32xf32> to vector<16x32xbf16>
    %38 = vector.extract_strided_slice %33 {offsets = [0, 0], sizes = [16, 32], strides = [1, 1]} : vector<16x128xf32> to vector<16x32xf32>
    %39 = arith.truncf %38 : vector<16x32xf32> to vector<16x32xbf16>
    %cst_19 = arith.constant dense<0.000000e+00> : vector<16x16xf32>
    %40 = tpu.matmul %35, %37, %cst_19 {dimension_numbers = #tpu.dot_dimension_numbers<[1], [1], [0], [0], [0, 0, 1, 0], [], []>} : vector<16x32xbf16>, vector<16x32xbf16>, vector<16x16xf32> -> vector<16x16xf32>
    %cst_20 = arith.constant 0.176776692 : f32
    %41 = vector.broadcast %cst_20 : f32 to vector<16x16xf32>
    %42 = arith.mulf %40, %41 : vector<16x16xf32>
    %cst_21 = arith.constant dense<0xFF800000> : vector<16xf32>
    %43 = vector.multi_reduction <maximumf>, %42, %cst_21 [1] : vector<16x16xf32> to vector<16xf32>
    %44 = vector.shape_cast %43 : vector<16xf32> to vector<16x1xf32>
    %45 = vector.broadcast %44 : vector<16x1xf32> to vector<16x16xf32>
    %46 = arith.subf %42, %45 : vector<16x16xf32>
    %47 = math.exp %46 : vector<16x16xf32>
    %cst_22 = arith.constant dense<0.000000e+00> : vector<16xf32>
    %48 = vector.multi_reduction <add>, %47, %cst_22 [1] : vector<16x16xf32> to vector<16xf32>
    %49 = vector.shape_cast %48 : vector<16xf32> to vector<16x1xf32>
    %50 = tpu.reciprocal %49 {approx = true} : vector<16x1xf32> -> vector<16x1xf32>
    %51 = vector.broadcast %50 : vector<16x1xf32> to vector<16x16xf32>
    %52 = arith.mulf %47, %51 : vector<16x16xf32>
    %53 = arith.truncf %52 : vector<16x16xf32> to vector<16x16xbf16>
    %cst_23 = arith.constant dense<0.000000e+00> : vector<16x32xf32>
    %54 = tpu.matmul %53, %39, %cst_23 {dimension_numbers = #tpu.dot_dimension_numbers<[1], [0], [0], [1], [0, 0, 1, 1], [], []>} : vector<16x16xbf16>, vector<16x32xbf16>, vector<16x32xf32> -> vector<16x32xf32>
    %55 = vector.extract_strided_slice %27 {offsets = [0, 32], sizes = [16, 32], strides = [1, 1]} : vector<16x128xf32> to vector<16x32xf32>
    %56 = arith.truncf %55 : vector<16x32xf32> to vector<16x32xbf16>
    %57 = vector.extract_strided_slice %30 {offsets = [0, 32], sizes = [16, 32], strides = [1, 1]} : vector<16x128xf32> to vector<16x32xf32>
    %58 = arith.truncf %57 : vector<16x32xf32> to vector<16x32xbf16>
    %59 = vector.extract_strided_slice %33 {offsets = [0, 32], sizes = [16, 32], strides = [1, 1]} : vector<16x128xf32> to vector<16x32xf32>
    %60 = arith.truncf %59 : vector<16x32xf32> to vector<16x32xbf16>
    %cst_24 = arith.constant dense<0.000000e+00> : vector<16x16xf32>
    %61 = tpu.matmul %56, %58, %cst_24 {dimension_numbers = #tpu.dot_dimension_numbers<[1], [1], [0], [0], [0, 0, 1, 0], [], []>} : vector<16x32xbf16>, vector<16x32xbf16>, vector<16x16xf32> -> vector<16x16xf32>
    %cst_25 = arith.constant 0.176776692 : f32
    %62 = vector.broadcast %cst_25 : f32 to vector<16x16xf32>
    %63 = arith.mulf %61, %62 : vector<16x16xf32>
    %cst_26 = arith.constant dense<0xFF800000> : vector<16xf32>
    %64 = vector.multi_reduction <maximumf>, %63, %cst_26 [1] : vector<16x16xf32> to vector<16xf32>
    %65 = vector.shape_cast %64 : vector<16xf32> to vector<16x1xf32>
    %66 = vector.broadcast %65 : vector<16x1xf32> to vector<16x16xf32>
    %67 = arith.subf %63, %66 : vector<16x16xf32>
    %68 = math.exp %67 : vector<16x16xf32>
    %cst_27 = arith.constant dense<0.000000e+00> : vector<16xf32>
    %69 = vector.multi_reduction <add>, %68, %cst_27 [1] : vector<16x16xf32> to vector<16xf32>
    %70 = vector.shape_cast %69 : vector<16xf32> to vector<16x1xf32>
    %71 = tpu.reciprocal %70 {approx = true} : vector<16x1xf32> -> vector<16x1xf32>
    %72 = vector.broadcast %71 : vector<16x1xf32> to vector<16x16xf32>
    %73 = arith.mulf %68, %72 : vector<16x16xf32>
    %74 = arith.truncf %73 : vector<16x16xf32> to vector<16x16xbf16>
    %cst_28 = arith.constant dense<0.000000e+00> : vector<16x32xf32>
    %75 = tpu.matmul %74, %60, %cst_28 {dimension_numbers = #tpu.dot_dimension_numbers<[1], [0], [0], [1], [0, 0, 1, 1], [], []>} : vector<16x16xbf16>, vector<16x32xbf16>, vector<16x32xf32> -> vector<16x32xf32>
    %76 = vector.extract_strided_slice %27 {offsets = [0, 64], sizes = [16, 32], strides = [1, 1]} : vector<16x128xf32> to vector<16x32xf32>
    %77 = arith.truncf %76 : vector<16x32xf32> to vector<16x32xbf16>
    %78 = vector.extract_strided_slice %30 {offsets = [0, 64], sizes = [16, 32], strides = [1, 1]} : vector<16x128xf32> to vector<16x32xf32>
    %79 = arith.truncf %78 : vector<16x32xf32> to vector<16x32xbf16>
    %80 = vector.extract_strided_slice %33 {offsets = [0, 64], sizes = [16, 32], strides = [1, 1]} : vector<16x128xf32> to vector<16x32xf32>
    %81 = arith.truncf %80 : vector<16x32xf32> to vector<16x32xbf16>
    %cst_29 = arith.constant dense<0.000000e+00> : vector<16x16xf32>
    %82 = tpu.matmul %77, %79, %cst_29 {dimension_numbers = #tpu.dot_dimension_numbers<[1], [1], [0], [0], [0, 0, 1, 0], [], []>} : vector<16x32xbf16>, vector<16x32xbf16>, vector<16x16xf32> -> vector<16x16xf32>
    %cst_30 = arith.constant 0.176776692 : f32
    %83 = vector.broadcast %cst_30 : f32 to vector<16x16xf32>
    %84 = arith.mulf %82, %83 : vector<16x16xf32>
    %cst_31 = arith.constant dense<0xFF800000> : vector<16xf32>
    %85 = vector.multi_reduction <maximumf>, %84, %cst_31 [1] : vector<16x16xf32> to vector<16xf32>
    %86 = vector.shape_cast %85 : vector<16xf32> to vector<16x1xf32>
    %87 = vector.broadcast %86 : vector<16x1xf32> to vector<16x16xf32>
    %88 = arith.subf %84, %87 : vector<16x16xf32>
    %89 = math.exp %88 : vector<16x16xf32>
    %cst_32 = arith.constant dense<0.000000e+00> : vector<16xf32>
    %90 = vector.multi_reduction <add>, %89, %cst_32 [1] : vector<16x16xf32> to vector<16xf32>
    %91 = vector.shape_cast %90 : vector<16xf32> to vector<16x1xf32>
    %92 = tpu.reciprocal %91 {approx = true} : vector<16x1xf32> -> vector<16x1xf32>
    %93 = vector.broadcast %92 : vector<16x1xf32> to vector<16x16xf32>
    %94 = arith.mulf %89, %93 : vector<16x16xf32>
    %95 = arith.truncf %94 : vector<16x16xf32> to vector<16x16xbf16>
    %cst_33 = arith.constant dense<0.000000e+00> : vector<16x32xf32>
    %96 = tpu.matmul %95, %81, %cst_33 {dimension_numbers = #tpu.dot_dimension_numbers<[1], [0], [0], [1], [0, 0, 1, 1], [], []>} : vector<16x16xbf16>, vector<16x32xbf16>, vector<16x32xf32> -> vector<16x32xf32>
    %97 = vector.extract_strided_slice %27 {offsets = [0, 96], sizes = [16, 32], strides = [1, 1]} : vector<16x128xf32> to vector<16x32xf32>
    %98 = arith.truncf %97 : vector<16x32xf32> to vector<16x32xbf16>
    %99 = vector.extract_strided_slice %30 {offsets = [0, 96], sizes = [16, 32], strides = [1, 1]} : vector<16x128xf32> to vector<16x32xf32>
    %100 = arith.truncf %99 : vector<16x32xf32> to vector<16x32xbf16>
    %101 = vector.extract_strided_slice %33 {offsets = [0, 96], sizes = [16, 32], strides = [1, 1]} : vector<16x128xf32> to vector<16x32xf32>
    %102 = arith.truncf %101 : vector<16x32xf32> to vector<16x32xbf16>
    %cst_34 = arith.constant dense<0.000000e+00> : vector<16x16xf32>
    %103 = tpu.matmul %98, %100, %cst_34 {dimension_numbers = #tpu.dot_dimension_numbers<[1], [1], [0], [0], [0, 0, 1, 0], [], []>} : vector<16x32xbf16>, vector<16x32xbf16>, vector<16x16xf32> -> vector<16x16xf32>
    %cst_35 = arith.constant 0.176776692 : f32
    %104 = vector.broadcast %cst_35 : f32 to vector<16x16xf32>
    %105 = arith.mulf %103, %104 : vector<16x16xf32>
    %cst_36 = arith.constant dense<0xFF800000> : vector<16xf32>
    %106 = vector.multi_reduction <maximumf>, %105, %cst_36 [1] : vector<16x16xf32> to vector<16xf32>
    %107 = vector.shape_cast %106 : vector<16xf32> to vector<16x1xf32>
    %108 = vector.broadcast %107 : vector<16x1xf32> to vector<16x16xf32>
    %109 = arith.subf %105, %108 : vector<16x16xf32>
    %110 = math.exp %109 : vector<16x16xf32>
    %cst_37 = arith.constant dense<0.000000e+00> : vector<16xf32>
    %111 = vector.multi_reduction <add>, %110, %cst_37 [1] : vector<16x16xf32> to vector<16xf32>
    %112 = vector.shape_cast %111 : vector<16xf32> to vector<16x1xf32>
    %113 = tpu.reciprocal %112 {approx = true} : vector<16x1xf32> -> vector<16x1xf32>
    %114 = vector.broadcast %113 : vector<16x1xf32> to vector<16x16xf32>
    %115 = arith.mulf %110, %114 : vector<16x16xf32>
    %116 = arith.truncf %115 : vector<16x16xf32> to vector<16x16xbf16>
    %cst_38 = arith.constant dense<0.000000e+00> : vector<16x32xf32>
    %117 = tpu.matmul %116, %102, %cst_38 {dimension_numbers = #tpu.dot_dimension_numbers<[1], [0], [0], [1], [0, 0, 1, 1], [], []>} : vector<16x16xbf16>, vector<16x32xbf16>, vector<16x32xf32> -> vector<16x32xf32>
    %118 = tpu.concatenate %54, %75, %96, %117 in 1 : vector<16x32xf32>, vector<16x32xf32>, vector<16x32xf32>, vector<16x32xf32> -> vector<16x128xf32>
    %119 = arith.truncf %118 : vector<16x128xf32> to vector<16x128xbf16>
    %c0_39 = arith.constant 0 : index
    %c0_40 = arith.constant 0 : index
    %120 = vector.load %arg7[%c0_39, %c0_40] : memref<128x128xf32, #tpu.memory_space<vmem>>, vector<128x128xf32>
    %121 = arith.truncf %120 : vector<128x128xf32> to vector<128x128xbf16>
    %cst_41 = arith.constant dense<0.000000e+00> : vector<16x128xf32>
    %122 = tpu.matmul %119, %121, %cst_41 {dimension_numbers = #tpu.dot_dimension_numbers<[1], [0], [0], [1], [0, 0, 1, 1], [], []>} : vector<16x128xbf16>, vector<128x128xbf16>, vector<16x128xf32> -> vector<16x128xf32>
    %c0_42 = arith.constant 0 : index
    %c0_43 = arith.constant 0 : index
    %123 = vector.load %arg8[%c0_42, %c0_43] : memref<1x128xf32, #tpu.memory_space<vmem>>, vector<1x128xf32>
    %124 = vector.broadcast %123 : vector<1x128xf32> to vector<16x128xf32>
    %125 = arith.addf %122, %124 : vector<16x128xf32>
    %126 = arith.addf %125, %1 : vector<16x128xf32>
    %c0_44 = arith.constant 0 : index
    %c0_45 = arith.constant 0 : index
    %127 = vector.load %arg9[%c0_44, %c0_45] : memref<1x128xf32, #tpu.memory_space<vmem>>, vector<1x128xf32>
    %c0_46 = arith.constant 0 : index
    %c0_47 = arith.constant 0 : index
    %128 = vector.load %arg10[%c0_46, %c0_47] : memref<1x128xf32, #tpu.memory_space<vmem>>, vector<1x128xf32>
    %cst_48 = arith.constant dense<0.000000e+00> : vector<16xf32>
    %129 = vector.multi_reduction <add>, %126, %cst_48 [1] : vector<16x128xf32> to vector<16xf32>
    %130 = vector.shape_cast %129 : vector<16xf32> to vector<16x1xf32>
    %cst_49 = arith.constant 1.280000e+02 : f32
    %131 = vector.broadcast %cst_49 : f32 to vector<16x1xf32>
    %132 = arith.divf %130, %131 : vector<16x1xf32>
    %133 = vector.broadcast %132 : vector<16x1xf32> to vector<16x128xf32>
    %134 = arith.subf %126, %133 : vector<16x128xf32>
    %135 = arith.mulf %134, %134 : vector<16x128xf32>
    %cst_50 = arith.constant dense<0.000000e+00> : vector<16xf32>
    %136 = vector.multi_reduction <add>, %135, %cst_50 [1] : vector<16x128xf32> to vector<16xf32>
    %137 = vector.shape_cast %136 : vector<16xf32> to vector<16x1xf32>
    %cst_51 = arith.constant 1.280000e+02 : f32
    %138 = vector.broadcast %cst_51 : f32 to vector<16x1xf32>
    %139 = arith.divf %137, %138 : vector<16x1xf32>
    %cst_52 = arith.constant 9.99999997E-7 : f32
    %140 = vector.broadcast %cst_52 : f32 to vector<16x1xf32>
    %141 = arith.addf %139, %140 : vector<16x1xf32>
    %142 = math.rsqrt %141 : vector<16x1xf32>
    %143 = vector.broadcast %142 : vector<16x1xf32> to vector<16x128xf32>
    %144 = arith.mulf %134, %143 : vector<16x128xf32>
    %145 = vector.broadcast %127 : vector<1x128xf32> to vector<16x128xf32>
    %146 = arith.mulf %144, %145 : vector<16x128xf32>
    %147 = vector.broadcast %128 : vector<1x128xf32> to vector<16x128xf32>
    %148 = arith.addf %146, %147 : vector<16x128xf32>
    %149 = arith.truncf %148 : vector<16x128xf32> to vector<16x128xbf16>
    %c0_53 = arith.constant 0 : index
    %c0_54 = arith.constant 0 : index
    %150 = vector.load %arg11[%c0_53, %c0_54] : memref<128x256xf32, #tpu.memory_space<vmem>>, vector<128x256xf32>
    %151 = arith.truncf %150 : vector<128x256xf32> to vector<128x256xbf16>
    %cst_55 = arith.constant dense<0.000000e+00> : vector<16x256xf32>
    %152 = tpu.matmul %149, %151, %cst_55 {dimension_numbers = #tpu.dot_dimension_numbers<[1], [0], [0], [1], [0, 0, 1, 1], [], []>} : vector<16x128xbf16>, vector<128x256xbf16>, vector<16x256xf32> -> vector<16x256xf32>
    %c0_56 = arith.constant 0 : index
    %c0_57 = arith.constant 0 : index
    %153 = vector.load %arg12[%c0_56, %c0_57] : memref<1x256xf32, #tpu.memory_space<vmem>>, vector<1x256xf32>
    %154 = vector.broadcast %153 : vector<1x256xf32> to vector<16x256xf32>
    %155 = arith.addf %152, %154 : vector<16x256xf32>
    %156 = arith.mulf %155, %155 : vector<16x256xf32>
    %157 = arith.mulf %155, %156 : vector<16x256xf32>
    %cst_58 = arith.constant 4.471500e-02 : f32
    %158 = vector.broadcast %cst_58 : f32 to vector<16x256xf32>
    %159 = arith.mulf %158, %157 : vector<16x256xf32>
    %160 = arith.addf %155, %159 : vector<16x256xf32>
    %cst_59 = arith.constant 0.797884583 : f32
    %161 = vector.broadcast %cst_59 : f32 to vector<16x256xf32>
    %162 = arith.mulf %161, %160 : vector<16x256xf32>
    %163 = math.tanh %162 : vector<16x256xf32>
    %cst_60 = arith.constant 1.000000e+00 : f32
    %164 = vector.broadcast %cst_60 : f32 to vector<16x256xf32>
    %165 = arith.addf %164, %163 : vector<16x256xf32>
    %cst_61 = arith.constant 5.000000e-01 : f32
    %166 = vector.broadcast %cst_61 : f32 to vector<16x256xf32>
    %167 = arith.mulf %166, %165 : vector<16x256xf32>
    %168 = arith.mulf %155, %167 : vector<16x256xf32>
    %169 = arith.truncf %168 : vector<16x256xf32> to vector<16x256xbf16>
    %c0_62 = arith.constant 0 : index
    %c0_63 = arith.constant 0 : index
    %170 = vector.load %arg13[%c0_62, %c0_63] : memref<256x128xf32, #tpu.memory_space<vmem>>, vector<256x128xf32>
    %171 = arith.truncf %170 : vector<256x128xf32> to vector<256x128xbf16>
    %cst_64 = arith.constant dense<0.000000e+00> : vector<16x128xf32>
    %172 = tpu.matmul %169, %171, %cst_64 {dimension_numbers = #tpu.dot_dimension_numbers<[1], [0], [0], [1], [0, 0, 1, 1], [], []>} : vector<16x256xbf16>, vector<256x128xbf16>, vector<16x128xf32> -> vector<16x128xf32>
    %c0_65 = arith.constant 0 : index
    %c0_66 = arith.constant 0 : index
    %173 = vector.load %arg14[%c0_65, %c0_66] : memref<1x128xf32, #tpu.memory_space<vmem>>, vector<1x128xf32>
    %174 = vector.broadcast %173 : vector<1x128xf32> to vector<16x128xf32>
    %175 = arith.addf %172, %174 : vector<16x128xf32>
    %176 = arith.addf %175, %126 : vector<16x128xf32>
    %c0_67 = arith.constant 0 : index
    %c0_68 = arith.constant 0 : index
    %c0_69 = arith.constant 0 : index
    %177 = vector.load %arg15[%c0_67, %c0_68, %c0_69] : memref<1x16x128xf32, #tpu.memory_space<vmem>>, vector<1x16x128xf32>
    %178 = vector.shape_cast %177 : vector<1x16x128xf32> to vector<16x128xf32>
    %179 = vector.shape_cast %176 : vector<16x128xf32> to vector<1x16x128xf32>
    tpu.vector_store %arg15[%c0_67, %c0_68, %c0_69], %179 {strides = array<i32>} : memref<1x16x128xf32, #tpu.memory_space<vmem>>, vector<1x16x128xf32>,
    return
  }
  func.func @transform_0(%arg0: i32) -> (i32, i32, i32) {
    %c0_i32 = arith.constant 0 : i32
    %c0_i32_0 = arith.constant 0 : i32
    %c0_i32_1 = arith.constant 0 : i32
    return %arg0, %c0_i32, %c0_i32_0 : i32, i32, i32
  }
  func.func @transform_1(%arg0: i32) -> (i32, i32) {
    %c0_i32 = arith.constant 0 : i32
    %c0_i32_0 = arith.constant 0 : i32
    %c0_i32_1 = arith.constant 0 : i32
    return %c0_i32, %c0_i32_0 : i32, i32
  }
  func.func @transform_2(%arg0: i32) -> (i32, i32) {
    %c0_i32 = arith.constant 0 : i32
    %c0_i32_0 = arith.constant 0 : i32
    %c0_i32_1 = arith.constant 0 : i32
    return %c0_i32, %c0_i32_0 : i32, i32
  }
  func.func @transform_3(%arg0: i32) -> (i32, i32) {
    %c0_i32 = arith.constant 0 : i32
    %c0_i32_0 = arith.constant 0 : i32
    %c0_i32_1 = arith.constant 0 : i32
    return %c0_i32, %c0_i32_0 : i32, i32
  }
  func.func @transform_4(%arg0: i32) -> (i32, i32) {
    %c0_i32 = arith.constant 0 : i32
    %c0_i32_0 = arith.constant 0 : i32
    %c0_i32_1 = arith.constant 0 : i32
    return %c0_i32, %c0_i32_0 : i32, i32
  }
  func.func @transform_5(%arg0: i32) -> (i32, i32) {
    %c0_i32 = arith.constant 0 : i32
    %c0_i32_0 = arith.constant 0 : i32
    %c0_i32_1 = arith.constant 0 : i32
    return %c0_i32, %c0_i32_0 : i32, i32
  }
  func.func @transform_6(%arg0: i32) -> (i32, i32) {
    %c0_i32 = arith.constant 0 : i32
    %c0_i32_0 = arith.constant 0 : i32
    %c0_i32_1 = arith.constant 0 : i32
    return %c0_i32, %c0_i32_0 : i32, i32
  }
  func.func @transform_7(%arg0: i32) -> (i32, i32) {
    %c0_i32 = arith.constant 0 : i32
    %c0_i32_0 = arith.constant 0 : i32
    %c0_i32_1 = arith.constant 0 : i32
    return %c0_i32, %c0_i32_0 : i32, i32
  }
  func.func @transform_8(%arg0: i32) -> (i32, i32) {
    %c0_i32 = arith.constant 0 : i32
    %c0_i32_0 = arith.constant 0 : i32
    %c0_i32_1 = arith.constant 0 : i32
    return %c0_i32, %c0_i32_0 : i32, i32
  }
  func.func @transform_9(%arg0: i32) -> (i32, i32) {
    %c0_i32 = arith.constant 0 : i32
    %c0_i32_0 = arith.constant 0 : i32
    %c0_i32_1 = arith.constant 0 : i32
    return %c0_i32, %c0_i32_0 : i32, i32
  }
  func.func @transform_10(%arg0: i32) -> (i32, i32) {
    %c0_i32 = arith.constant 0 : i32
    %c0_i32_0 = arith.constant 0 : i32
    %c0_i32_1 = arith.constant 0 : i32
    return %c0_i32, %c0_i32_0 : i32, i32
  }
  func.func @transform_11(%arg0: i32) -> (i32, i32) {
    %c0_i32 = arith.constant 0 : i32
    %c0_i32_0 = arith.constant 0 : i32
    %c0_i32_1 = arith.constant 0 : i32
    return %c0_i32, %c0_i32_0 : i32, i32
  }
  func.func @transform_12(%arg0: i32) -> (i32, i32) {
    %c0_i32 = arith.constant 0 : i32
    %c0_i32_0 = arith.constant 0 : i32
    %c0_i32_1 = arith.constant 0 : i32
    return %c0_i32, %c0_i32_0 : i32, i32
  }
  func.func @transform_13(%arg0: i32) -> (i32, i32) {
    %c0_i32 = arith.constant 0 : i32
    %c0_i32_0 = arith.constant 0 : i32
    %c0_i32_1 = arith.constant 0 : i32
    return %c0_i32, %c0_i32_0 : i32, i32
  }
  func.func @transform_14(%arg0: i32) -> (i32, i32, i32) {
    %c0_i32 = arith.constant 0 : i32
    %c0_i32_0 = arith.constant 0 : i32
    %c0_i32_1 = arith.constant 0 : i32
    return %arg0, %c0_i32, %c0_i32_0 : i32, i32, i32
  }
}

</mosaic_0001>

<llo_original>
// kernel: tpu_custom_call.1
$region0: #{tpu_custom_call.1}
  #allocation0 [shape = 'u32[]', space=smem, size = 0x4, offset = 0x4, fixed_abs, tag = 'smem constant byte address 0x4 - core index']
  #allocation1 [shape = 'u32[144,128]{1,0:T(1,128)}', space=vmem, size = 0x12000, scoped, tag = 'internal scratch']
  %s0 = inlined_call_operand.hbm [shape: f32[2,16,128], index: 0, kind: input, shape index: {}]
  %s1 = inlined_call_operand.vmem [shape: f32[1,128], index: 1, kind: input, shape index: {}]
  %s2 = inlined_call_operand.hbm [shape: f32[1,128], index: 2, kind: input, shape index: {}]
  %s3 = inlined_call_operand.hbm [shape: f32[128,128], index: 3, kind: input, shape index: {}]
  %s4 = inlined_call_operand.hbm [shape: f32[128,128], index: 4, kind: input, shape index: {}]
  %s5 = inlined_call_operand.hbm [shape: f32[128,128], index: 5, kind: input, shape index: {}]
  %s6 = inlined_call_operand.hbm [shape: f32[128,128], index: 6, kind: input, shape index: {}]
  %s7 = inlined_call_operand.vmem [shape: f32[1,128], index: 7, kind: input, shape index: {}]
  %s8 = inlined_call_operand.vmem [shape: f32[1,128], index: 8, kind: input, shape index: {}]
  %s9 = inlined_call_operand.vmem [shape: f32[1,128], index: 9, kind: input, shape index: {}]
  %s10 = inlined_call_operand.hbm [shape: f32[128,256], index: 10, kind: input, shape index: {}]
  %s11 = inlined_call_operand.vmem [shape: f32[1,256], index: 11, kind: input, shape index: {}]
  %s12 = inlined_call_operand.hbm [shape: f32[256,128], index: 12, kind: input, shape index: {}]
  %s13 = inlined_call_operand.vmem [shape: f32[1,128], index: 13, kind: input, shape index: {}]
  %s14 = inlined_call_operand.hbm [shape: f32[2,16,128], index: 14, kind: output, shape index: {}]
  %s15 = sld [smem:[#allocation0]]
  $region121: #{tpu_custom_call.1} parent=0
    _
  %s17 = ssub.s32 1, %s15
  %s18 = scalar_select 0, %s17, %s15
  $region1: #{tpu_custom_call.1} parent=0
    #allocation2 [shape = 'u8[16384]{0}', space=vmem, size = 0x4000, scoped, tag = 'input window, operand 0']
    #allocation3 [shape = 's32[2]{0}', space=sflag, size = 0x8, scoped, tag = 'scoped memory for tpu_custom_call.1']
    #allocation4 [shape = 's32[2]{0}', space=sflag, size = 0x8, scoped, tag = 'scoped memory for tpu_custom_call.1']
    #allocation5 [shape = 'u8[512]{0}', space=vmem, size = 0x400, scoped, tag = 'input window, operand 2, single buffered']
    #allocation6 [shape = 's32[1]{0}', space=sflag, size = 0x4, scoped, tag = 'scoped memory for tpu_custom_call.1']
    #allocation7 [shape = 'u8[65536]{0}', space=vmem, size = 0x10000, scoped, tag = 'input window, operand 3, single buffered']
    #allocation8 [shape = 'u8[65536]{0}', space=vmem, size = 0x10000, scoped, tag = 'input window, operand 4, single buffered']
    #allocation9 [shape = 's32[1]{0}', space=sflag, size = 0x4, scoped, tag = 'scoped memory for tpu_custom_call.1']
    #allocation10 [shape = 'u8[65536]{0}', space=vmem, size = 0x10000, scoped, tag = 'input window, operand 5, single buffered']
    #allocation11 [shape = 'u8[65536]{0}', space=vmem, size = 0x10000, scoped, tag = 'input window, operand 6, single buffered']
    #allocation12 [shape = 's32[1]{0}', space=sflag, size = 0x4, scoped, tag = 'scoped memory for tpu_custom_call.1']
    #allocation13 [shape = 'u8[131072]{0}', space=vmem, size = 0x20000, scoped, tag = 'input window, operand 10, single buffered']
    #allocation14 [shape = 'u8[131072]{0}', space=vmem, size = 0x20000, scoped, tag = 'input window, operand 12, single buffered']
    #allocation15 [shape = 's32[1]{0}', space=sflag, size = 0x4, scoped, tag = 'scoped memory for tpu_custom_call.1']
    #allocation16 [shape = 'u8[16384]{0}', space=vmem, size = 0x4000, scoped, tag = 'output window, operand 0']
    %19 = vsyncpa [#allocation3], 0
    %s20 = scalar_lea.sflag [#allocation3], 1
    %21 = vsyncpa %s20, 0
    %22 = vsyncpa [#allocation6], 0
    %23 = vsyncpa [#allocation9], 0
    %24 = vsyncpa [#allocation12], 0
    %25 = vsyncpa [#allocation15], 0
    %26 = vsyncpa [#allocation4], 0
    %s27 = scalar_lea.sflag [#allocation4], 1
    %28 = vsyncpa %s27, 0
    loop: start=0, step=1, limit=4
    $region2: #{tpu_custom_call.1} parent=1 // loop_pre_header
      _
    $region3: #{tpu_custom_call.1} parent=1 // loop_header
      %s30 = sphi 0, %s34
      %p31 = scmp.ge.s32.totalorder %s30, 4
      %s40 = sphi 0, %s42
      %s43 = sphi 0, %s40
      %s44 = sphi 0, %s43
      %s60 = sphi 0, %s44
      %s64 = sphi 0, %s64
      %s66 = sphi 0, %s64
      %s67 = sphi 0, %s66
      %s81 = sphi 0, %s67
      %s85 = sphi 0, %s85
      %s87 = sphi 0, %s85
      %s88 = sphi 0, %s87
      %s102 = sphi 0, %s88
      %s106 = sphi 0, %s106
      %s108 = sphi 0, %s106
      %s109 = sphi 0, %s108
      %s123 = sphi 0, %s109
      %s127 = sphi 0, %s127
      %s129 = sphi 0, %s127
      %s130 = sphi 0, %s129
      %s144 = sphi 0, %s130
      %s148 = sphi 0, %s148
      %s150 = sphi 0, %s148
      %s151 = sphi 0, %s150
      %s165 = sphi 0, %s151
      %s169 = sphi 0, %s169
      %s171 = sphi 0, %s169
      %s172 = sphi 0, %s171
      %s186 = sphi 0, %s172
      %s190 = sphi 0, %s190
      %s192 = sphi 0, %s190
      %s193 = sphi 0, %s192
      %s207 = sphi 0, %s193
      %s211 = sphi 0, %s211
      %s213 = sphi 0, %s211
      %s214 = sphi 0, %s213
      %s228 = sphi 0, %s214
      %s232 = sphi 0, %s232
      %s234 = sphi 0, %s232
      %s235 = sphi 0, %s234
      %s249 = sphi 0, %s235
      %s253 = sphi 0, %s253
      %s255 = sphi 0, %s253
      %s256 = sphi 0, %s255
      %s270 = sphi 0, %s256
      %s274 = sphi 0, %s274
      %s276 = sphi 0, %s274
      %s277 = sphi 0, %s276
      %s291 = sphi 0, %s277
      %s295 = sphi 0, %s295
      %s297 = sphi 0, %s295
      %s298 = sphi 0, %s297
      %s312 = sphi 0, %s298
      %s316 = sphi 0, %s316
      %s318 = sphi 0, %s316
      %s319 = sphi 0, %s318
      %s333 = sphi 0, %s319
      %s339 = sphi 0, %s341
      %s342 = sphi 0, %s339
      %s343 = sphi 0, %s342
      %s359 = sphi 0, %s343
    $region4: #{tpu_custom_call.1} parent=1 // loop_header_branch
      %33 = sbr.rel (%p31) target = $region8
    $region5: #{tpu_custom_call.1} parent=1 // loop_body
      %s35 = ssub.s32 %s30, 1
      %s36 = ssub.s32 %s30, 2
      %s37 = sadd.s32 %s30, 1
      %s38 = ssub.s32 %s30, %s37
      %p39 = scmp.eq.s32.totalorder %s38, 0
      %s41 = sadd.s32 %s40, 1
      %s42 = scalar_select %p39, %s40, %s41
      %p45 = pneg %p39
      %p46 = scmp.eq.s32.totalorder %s30, 1
      %p47 = por %p45, %p46
      %p48 = scmp.ne.s32.totalorder %s40, %s43
      %p49 = scmp.eq.s32.totalorder %s30, 0
      %p50 = por %p48, %p49
      %p51 = scmp.ne.s32.totalorder %s40, %s43
      %p52 = scmp.eq.s32.totalorder %s35, 1
      %p53 = por %p51, %p52
      %p54 = scmp.ne.s32.totalorder %s43, %s44
      %p55 = scmp.eq.s32.totalorder %s35, 0
      %p56 = por %p54, %p55
      %p57 = scmp.ne.s32.totalorder %s43, %s44
      %p58 = scmp.eq.s32.totalorder %s36, 1
      %p59 = por %p57, %p58
      %p61 = scmp.ne.s32.totalorder %s44, %s60
      %p62 = scmp.eq.s32.totalorder %s36, 0
      %p63 = por %p61, %p62
      %s65 = sadd.s32 %s64, 1
      %p68 = scmp.eq.s32.totalorder %s30, 1
      %p69 = scmp.ne.s32.totalorder %s64, %s66
      %p70 = scmp.eq.s32.totalorder %s30, 0
      %p71 = por %p69, %p70
      %p72 = scmp.ne.s32.totalorder %s64, %s66
      %p73 = scmp.eq.s32.totalorder %s35, 1
      %p74 = por %p72, %p73
      %p75 = scmp.ne.s32.totalorder %s66, %s67
      %p76 = scmp.eq.s32.totalorder %s35, 0
      %p77 = por %p75, %p76
      %p78 = scmp.ne.s32.totalorder %s66, %s67
      %p79 = scmp.eq.s32.totalorder %s36, 1
      %p80 = por %p78, %p79
      %p82 = scmp.ne.s32.totalorder %s67, %s81
      %p83 = scmp.eq.s32.totalorder %s36, 0
      %p84 = por %p82, %p83
      %s86 = sadd.s32 %s85, 1
      %p89 = scmp.eq.s32.totalorder %s30, 1
      %p90 = scmp.ne.s32.totalorder %s85, %s87
      %p91 = scmp.eq.s32.totalorder %s30, 0
      %p92 = por %p90, %p91
      %p93 = scmp.ne.s32.totalorder %s85, %s87
      %p94 = scmp.eq.s32.totalorder %s35, 1
      %p95 = por %p93, %p94
      %p96 = scmp.ne.s32.totalorder %s87, %s88
      %p97 = scmp.eq.s32.totalorder %s35, 0
      %p98 = por %p96, %p97
      %p99 = scmp.ne.s32.totalorder %s87, %s88
      %p100 = scmp.eq.s32.totalorder %s36, 1
      %p101 = por %p99, %p100
      %p103 = scmp.ne.s32.totalorder %s88, %s102
      %p104 = scmp.eq.s32.totalorder %s36, 0
      %p105 = por %p103, %p104
      %s107 = sadd.s32 %s106, 1
      %p110 = scmp.eq.s32.totalorder %s30, 1
      %p111 = scmp.ne.s32.totalorder %s106, %s108
      %p112 = scmp.eq.s32.totalorder %s30, 0
      %p113 = por %p111, %p112
      %p114 = scmp.ne.s32.totalorder %s106, %s108
      %p115 = scmp.eq.s32.totalorder %s35, 1
      %p116 = por %p114, %p115
      %p117 = scmp.ne.s32.totalorder %s108, %s109
      %p118 = scmp.eq.s32.totalorder %s35, 0
      %p119 = por %p117, %p118
      %p120 = scmp.ne.s32.totalorder %s108, %s109
      %p121 = scmp.eq.s32.totalorder %s36, 1
      %p122 = por %p120, %p121
      %p124 = scmp.ne.s32.totalorder %s109, %s123
      %p125 = scmp.eq.s32.totalorder %s36, 0
      %p126 = por %p124, %p125
      %s128 = sadd.s32 %s127, 1
      %p131 = scmp.eq.s32.totalorder %s30, 1
      %p132 = scmp.ne.s32.totalorder %s127, %s129
      %p133 = scmp.eq.s32.totalorder %s30, 0
      %p134 = por %p132, %p133
      %p135 = scmp.ne.s32.totalorder %s127, %s129
      %p136 = scmp.eq.s32.totalorder %s35, 1
      %p137 = por %p135, %p136
      %p138 = scmp.ne.s32.totalorder %s129, %s130
      %p139 = scmp.eq.s32.totalorder %s35, 0
      %p140 = por %p138, %p139
      %p141 = scmp.ne.s32.totalorder %s129, %s130
      %p142 = scmp.eq.s32.totalorder %s36, 1
      %p143 = por %p141, %p142
      %p145 = scmp.ne.s32.totalorder %s130, %s144
      %p146 = scmp.eq.s32.totalorder %s36, 0
      %p147 = por %p145, %p146
      %s149 = sadd.s32 %s148, 1
      %p152 = scmp.eq.s32.totalorder %s30, 1
      %p153 = scmp.ne.s32.totalorder %s148, %s150
      %p154 = scmp.eq.s32.totalorder %s30, 0
      %p155 = por %p153, %p154
      %p156 = scmp.ne.s32.totalorder %s148, %s150
      %p157 = scmp.eq.s32.totalorder %s35, 1
      %p158 = por %p156, %p157
      %p159 = scmp.ne.s32.totalorder %s150, %s151
      %p160 = scmp.eq.s32.totalorder %s35, 0
      %p161 = por %p159, %p160
      %p162 = scmp.ne.s32.totalorder %s150, %s151
      %p163 = scmp.eq.s32.totalorder %s36, 1
      %p164 = por %p162, %p163
      %p166 = scmp.ne.s32.totalorder %s151, %s165
      %p167 = scmp.eq.s32.totalorder %s36, 0
      %p168 = por %p166, %p167
      %s170 = sadd.s32 %s169, 1
      %p173 = scmp.eq.s32.totalorder %s30, 1
      %p174 = scmp.ne.s32.totalorder %s169, %s171
      %p175 = scmp.eq.s32.totalorder %s30, 0
      %p176 = por %p174, %p175
      %p177 = scmp.ne.s32.totalorder %s169, %s171
      %p178 = scmp.eq.s32.totalorder %s35, 1
      %p179 = por %p177, %p178
      %p180 = scmp.ne.s32.totalorder %s171, %s172
      %p181 = scmp.eq.s32.totalorder %s35, 0
      %p182 = por %p180, %p181
      %p183 = scmp.ne.s32.totalorder %s171, %s172
      %p184 = scmp.eq.s32.totalorder %s36, 1
      %p185 = por %p183, %p184
      %p187 = scmp.ne.s32.totalorder %s172, %s186
      %p188 = scmp.eq.s32.totalorder %s36, 0
      %p189 = por %p187, %p188
      %s191 = sadd.s32 %s190, 1
      %p194 = scmp.eq.s32.totalorder %s30, 1
      %p195 = scmp.ne.s32.totalorder %s190, %s192
      %p196 = scmp.eq.s32.totalorder %s30, 0
      %p197 = por %p195, %p196
      %p198 = scmp.ne.s32.totalorder %s190, %s192
      %p199 = scmp.eq.s32.totalorder %s35, 1
      %p200 = por %p198, %p199
      %p201 = scmp.ne.s32.totalorder %s192, %s193
      %p202 = scmp.eq.s32.totalorder %s35, 0
      %p203 = por %p201, %p202
      %p204 = scmp.ne.s32.totalorder %s192, %s193
      %p205 = scmp.eq.s32.totalorder %s36, 1
      %p206 = por %p204, %p205
      %p208 = scmp.ne.s32.totalorder %s193, %s207
      %p209 = scmp.eq.s32.totalorder %s36, 0
      %p210 = por %p208, %p209
      %s212 = sadd.s32 %s211, 1
      %p215 = scmp.eq.s32.totalorder %s30, 1
      %p216 = scmp.ne.s32.totalorder %s211, %s213
      %p217 = scmp.eq.s32.totalorder %s30, 0
      %p218 = por %p216, %p217
      %p219 = scmp.ne.s32.totalorder %s211, %s213
      %p220 = scmp.eq.s32.totalorder %s35, 1
      %p221 = por %p219, %p220
      %p222 = scmp.ne.s32.totalorder %s213, %s214
      %p223 = scmp.eq.s32.totalorder %s35, 0
      %p224 = por %p222, %p223
      %p225 = scmp.ne.s32.totalorder %s213, %s214
      %p226 = scmp.eq.s32.totalorder %s36, 1
      %p227 = por %p225, %p226
      %p229 = scmp.ne.s32.totalorder %s214, %s228
      %p230 = scmp.eq.s32.totalorder %s36, 0
      %p231 = por %p229, %p230
      %s233 = sadd.s32 %s232, 1
      %p236 = scmp.eq.s32.totalorder %s30, 1
      %p237 = scmp.ne.s32.totalorder %s232, %s234
      %p238 = scmp.eq.s32.totalorder %s30, 0
      %p239 = por %p237, %p238
      %p240 = scmp.ne.s32.totalorder %s232, %s234
      %p241 = scmp.eq.s32.totalorder %s35, 1
      %p242 = por %p240, %p241
      %p243 = scmp.ne.s32.totalorder %s234, %s235
      %p244 = scmp.eq.s32.totalorder %s35, 0
      %p245 = por %p243, %p244
      %p246 = scmp.ne.s32.totalorder %s234, %s235
      %p247 = scmp.eq.s32.totalorder %s36, 1
      %p248 = por %p246, %p247
      %p250 = scmp.ne.s32.totalorder %s235, %s249
      %p251 = scmp.eq.s32.totalorder %s36, 0
      %p252 = por %p250, %p251
      %s254 = sadd.s32 %s253, 1
      %p257 = scmp.eq.s32.totalorder %s30, 1
      %p258 = scmp.ne.s32.totalorder %s253, %s255
      %p259 = scmp.eq.s32.totalorder %s30, 0
      %p260 = por %p258, %p259
      %p261 = scmp.ne.s32.totalorder %s253, %s255
      %p262 = scmp.eq.s32.totalorder %s35, 1
      %p263 = por %p261, %p262
      %p264 = scmp.ne.s32.totalorder %s255, %s256
      %p265 = scmp.eq.s32.totalorder %s35, 0
      %p266 = por %p264, %p265
      %p267 = scmp.ne.s32.totalorder %s255, %s256
      %p268 = scmp.eq.s32.totalorder %s36, 1
      %p269 = por %p267, %p268
      %p271 = scmp.ne.s32.totalorder %s256, %s270
      %p272 = scmp.eq.s32.totalorder %s36, 0
      %p273 = por %p271, %p272
      %s275 = sadd.s32 %s274, 1
      %p278 = scmp.eq.s32.totalorder %s30, 1
      %p279 = scmp.ne.s32.totalorder %s274, %s276
      %p280 = scmp.eq.s32.totalorder %s30, 0
      %p281 = por %p279, %p280
      %p282 = scmp.ne.s32.totalorder %s274, %s276
      %p283 = scmp.eq.s32.totalorder %s35, 1
      %p284 = por %p282, %p283
      %p285 = scmp.ne.s32.totalorder %s276, %s277
      %p286 = scmp.eq.s32.totalorder %s35, 0
      %p287 = por %p285, %p286
      %p288 = scmp.ne.s32.totalorder %s276, %s277
      %p289 = scmp.eq.s32.totalorder %s36, 1
      %p290 = por %p288, %p289
      %p292 = scmp.ne.s32.totalorder %s277, %s291
      %p293 = scmp.eq.s32.totalorder %s36, 0
      %p294 = por %p292, %p293
      %s296 = sadd.s32 %s295, 1
      %p299 = scmp.eq.s32.totalorder %s30, 1
      %p300 = scmp.ne.s32.totalorder %s295, %s297
      %p301 = scmp.eq.s32.totalorder %s30, 0
      %p302 = por %p300, %p301
      %p303 = scmp.ne.s32.totalorder %s295, %s297
      %p304 = scmp.eq.s32.totalorder %s35, 1
      %p305 = por %p303, %p304
      %p306 = scmp.ne.s32.totalorder %s297, %s298
      %p307 = scmp.eq.s32.totalorder %s35, 0
      %p308 = por %p306, %p307
      %p309 = scmp.ne.s32.totalorder %s297, %s298
      %p310 = scmp.eq.s32.totalorder %s36, 1
      %p311 = por %p309, %p310
      %p313 = scmp.ne.s32.totalorder %s298, %s312
      %p314 = scmp.eq.s32.totalorder %s36, 0
      %p315 = por %p313, %p314
      %s317 = sadd.s32 %s316, 1
      %p320 = scmp.eq.s32.totalorder %s30, 1
      %p321 = scmp.ne.s32.totalorder %s316, %s318
      %p322 = scmp.eq.s32.totalorder %s30, 0
      %p323 = por %p321, %p322
      %p324 = scmp.ne.s32.totalorder %s316, %s318
      %p325 = scmp.eq.s32.totalorder %s35, 1
      %p326 = por %p324, %p325
      %p327 = scmp.ne.s32.totalorder %s318, %s319
      %p328 = scmp.eq.s32.totalorder %s35, 0
      %p329 = por %p327, %p328
      %p330 = scmp.ne.s32.totalorder %s318, %s319
      %p331 = scmp.eq.s32.totalorder %s36, 1
      %p332 = por %p330, %p331
      %p334 = scmp.ne.s32.totalorder %s319, %s333
      %p335 = scmp.eq.s32.totalorder %s36, 0
      %p336 = por %p334, %p335
      %s337 = ssub.s32 %s30, %s37
      %p338 = scmp.eq.s32.totalorder %s337, 0
      %s340 = sadd.s32 %s339, 1
      %s341 = scalar_select %p338, %s339, %s340
      %p344 = pneg %p338
      %p345 = scmp.eq.s32.totalorder %s30, 1
      %p346 = por %p344, %p345
      %p347 = scmp.ne.s32.totalorder %s339, %s342
      %p348 = scmp.eq.s32.totalorder %s30, 0
      %p349 = por %p347, %p348
      %p350 = scmp.ne.s32.totalorder %s339, %s342
      %p351 = scmp.eq.s32.totalorder %s35, 1
      %p352 = por %p350, %p351
      %p353 = scmp.ne.s32.totalorder %s342, %s343
      %p354 = scmp.eq.s32.totalorder %s35, 0
      %p355 = por %p353, %p354
      %p356 = scmp.ne.s32.totalorder %s342, %s343
      %p357 = scmp.eq.s32.totalorder %s36, 1
      %p358 = por %p356, %p357
      %p360 = scmp.ne.s32.totalorder %s343, %s359
      %p361 = scmp.eq.s32.totalorder %s36, 0
      %p362 = por %p360, %p361
      %p363 = scmp.le.s32.totalorder 1, %s30
      %p364 = scmp.lt.s32.totalorder %s30, 3
      %p365 = pnand %p363, %p364
      %p366 = pneg %p365
      // Predicated region
      $region9: #{tpu_custom_call.1} parent=5 // pred_check
        _
      $region10: #{tpu_custom_call.1} parent=5 // pred_check_branch
        %368 = sbr.rel (%p365) target = $region12
      $region11: #{tpu_custom_call.1} parent=5 // pred_region
        %s369 = ssub.s32 %s30, 1
        // Predicated region
        $region13: #{tpu_custom_call.1} parent=11 // pred_check
          %p370 = pneg %p77
        $region14: #{tpu_custom_call.1} parent=11 // pred_check_branch
          %372 = sbr.rel (%p370) target = $region16
        $region15: #{tpu_custom_call.1} parent=11 // pred_region
          _
        $region16: #{tpu_custom_call.1} parent=11 // pred_fallthru
          _
        // Predicated region
        $region17: #{tpu_custom_call.1} parent=11 // pred_check
          %p373 = pneg %p98
        $region18: #{tpu_custom_call.1} parent=11 // pred_check_branch
          %375 = sbr.rel (%p373) target = $region20
        $region19: #{tpu_custom_call.1} parent=11 // pred_region
          %s377 = ssub.s32 16, 16
          %378 = vsyncadd [#allocation6], %s377
          %s380 = sshll.u32 [#allocation5], 4
          %s381 = int_to_ptr.vmem [resolvable:$true] %s380
          %383 = dma.hbm_to_vmem [thread:$0]  %s2, 16, %s381, [#allocation6]
        $region20: #{tpu_custom_call.1} parent=11 // pred_fallthru
          _
        // Predicated region
        $region21: #{tpu_custom_call.1} parent=11 // pred_check
          %p384 = pneg %p119
        $region22: #{tpu_custom_call.1} parent=11 // pred_check_branch
          %386 = sbr.rel (%p384) target = $region24
        $region23: #{tpu_custom_call.1} parent=11 // pred_region
          %s388 = ssub.s32 2048, 2048
          %389 = vsyncadd [#allocation6], %s388
          %s390 = sshll.u32 [#allocation7], 4
          %s391 = int_to_ptr.vmem [resolvable:$true] %s390
          %396 = dma.hbm_to_vmem [thread:$0]  %s3, 2048, %s391, [#allocation6], 128, 128, 8
        $region24: #{tpu_custom_call.1} parent=11 // pred_fallthru
          _
        // Predicated region
        $region25: #{tpu_custom_call.1} parent=11 // pred_check
          %p397 = pneg %p140
        $region26: #{tpu_custom_call.1} parent=11 // pred_check_branch
          %399 = sbr.rel (%p397) target = $region28
        $region27: #{tpu_custom_call.1} parent=11 // pred_region
          %s401 = ssub.s32 2048, 2048
          %402 = vsyncadd [#allocation9], %s401
          %s403 = sshll.u32 [#allocation8], 4
          %s404 = int_to_ptr.vmem [resolvable:$true] %s403
          %409 = dma.hbm_to_vmem [thread:$0]  %s4, 2048, %s404, [#allocation9], 128, 128, 8
        $region28: #{tpu_custom_call.1} parent=11 // pred_fallthru
          _
        // Predicated region
        $region29: #{tpu_custom_call.1} parent=11 // pred_check
          %p410 = pneg %p161
        $region30: #{tpu_custom_call.1} parent=11 // pred_check_branch
          %412 = sbr.rel (%p410) target = $region32
        $region31: #{tpu_custom_call.1} parent=11 // pred_region
          %s414 = ssub.s32 2048, 2048
          %415 = vsyncadd [#allocation9], %s414
          %s416 = sshll.u32 [#allocation10], 4
          %s417 = int_to_ptr.vmem [resolvable:$true] %s416
          %422 = dma.hbm_to_vmem [thread:$0]  %s5, 2048, %s417, [#allocation9], 128, 128, 8
        $region32: #{tpu_custom_call.1} parent=11 // pred_fallthru
          _
        // Predicated region
        $region33: #{tpu_custom_call.1} parent=11 // pred_check
          %p423 = pneg %p182
        $region34: #{tpu_custom_call.1} parent=11 // pred_check_branch
          %425 = sbr.rel (%p423) target = $region36
        $region35: #{tpu_custom_call.1} parent=11 // pred_region
          %s427 = ssub.s32 2048, 2048
          %428 = vsyncadd [#allocation12], %s427
          %s429 = sshll.u32 [#allocation11], 4
          %s430 = int_to_ptr.vmem [resolvable:$true] %s429
          %435 = dma.hbm_to_vmem [thread:$0]  %s6, 2048, %s430, [#allocation12], 128, 128, 8
        $region36: #{tpu_custom_call.1} parent=11 // pred_fallthru
          _
        // Predicated region
        $region37: #{tpu_custom_call.1} parent=11 // pred_check
          %p436 = pneg %p203
        $region38: #{tpu_custom_call.1} parent=11 // pred_check_branch
          %438 = sbr.rel (%p436) target = $region40
        $region39: #{tpu_custom_call.1} parent=11 // pred_region
          _
        $region40: #{tpu_custom_call.1} parent=11 // pred_fallthru
          _
        // Predicated region
        $region41: #{tpu_custom_call.1} parent=11 // pred_check
          %p439 = pneg %p224
        $region42: #{tpu_custom_call.1} parent=11 // pred_check_branch
          %441 = sbr.rel (%p439) target = $region44
        $region43: #{tpu_custom_call.1} parent=11 // pred_region
          _
        $region44: #{tpu_custom_call.1} parent=11 // pred_fallthru
          _
        // Predicated region
        $region45: #{tpu_custom_call.1} parent=11 // pred_check
          %p442 = pneg %p245
        $region46: #{tpu_custom_call.1} parent=11 // pred_check_branch
          %444 = sbr.rel (%p442) target = $region48
        $region47: #{tpu_custom_call.1} parent=11 // pred_region
          _
        $region48: #{tpu_custom_call.1} parent=11 // pred_fallthru
          _
        // Predicated region
        $region49: #{tpu_custom_call.1} parent=11 // pred_check
          %p445 = pneg %p266
        $region50: #{tpu_custom_call.1} parent=11 // pred_check_branch
          %447 = sbr.rel (%p445) target = $region52
        $region51: #{tpu_custom_call.1} parent=11 // pred_region
          %s449 = ssub.s32 4096, 4096
          %450 = vsyncadd [#allocation12], %s449
          %s451 = sshll.u32 [#allocation13], 4
          %s452 = int_to_ptr.vmem [resolvable:$true] %s451
          %457 = dma.hbm_to_vmem [thread:$0]  %s10, 4096, %s452, [#allocation12], 256, 256, 16
        $region52: #{tpu_custom_call.1} parent=11 // pred_fallthru
          _
        // Predicated region
        $region53: #{tpu_custom_call.1} parent=11 // pred_check
          %p458 = pneg %p287
        $region54: #{tpu_custom_call.1} parent=11 // pred_check_branch
          %460 = sbr.rel (%p458) target = $region56
        $region55: #{tpu_custom_call.1} parent=11 // pred_region
          _
        $region56: #{tpu_custom_call.1} parent=11 // pred_fallthru
          _
        // Predicated region
        $region57: #{tpu_custom_call.1} parent=11 // pred_check
          %p461 = pneg %p308
        $region58: #{tpu_custom_call.1} parent=11 // pred_check_branch
          %463 = sbr.rel (%p461) target = $region60
        $region59: #{tpu_custom_call.1} parent=11 // pred_region
          %s465 = ssub.s32 4096, 4096
          %466 = vsyncadd [#allocation15], %s465
          %s467 = sshll.u32 [#allocation14], 4
          %s468 = int_to_ptr.vmem [resolvable:$true] %s467
          %473 = dma.hbm_to_vmem [thread:$0]  %s12, 4096, %s468, [#allocation15], 128, 128, 8
        $region60: #{tpu_custom_call.1} parent=11 // pred_fallthru
          _
        // Predicated region
        $region61: #{tpu_custom_call.1} parent=11 // pred_check
          %p474 = pneg %p329
        $region62: #{tpu_custom_call.1} parent=11 // pred_check_branch
          %476 = sbr.rel (%p474) target = $region64
        $region63: #{tpu_custom_call.1} parent=11 // pred_region
          _
        $region64: #{tpu_custom_call.1} parent=11 // pred_fallthru
          _
      $region12: #{tpu_custom_call.1} parent=5 // pred_fallthru
        _
      %p477 = scmp.lt.s32.totalorder %s30, 2
      // Predicated region
      $region65: #{tpu_custom_call.1} parent=5 // pred_check
        %p478 = pneg %p477
      $region66: #{tpu_custom_call.1} parent=5 // pred_check_branch
        %480 = sbr.rel (%p478) target = $region68
      $region67: #{tpu_custom_call.1} parent=5 // pred_region
        // Predicated region
        $region69: #{tpu_custom_call.1} parent=67 // pred_check
          %p481 = pneg %p50
        $region70: #{tpu_custom_call.1} parent=67 // pred_check_branch
          %483 = sbr.rel (%p481) target = $region72
        $region71: #{tpu_custom_call.1} parent=67 // pred_region
          %s484 = sand.u32 %s40, 1
          %s485 = scalar_lea.sflag [#allocation3], %s484
          %s486 = sand.u32 %s40, 1
          %s487 = smul.addr %s486, 16
          %s488 = scalar_lea.vmem [#allocation2], %s487
          %s490 = ssub.s32 256, 256
          %491 = vsyncadd %s485, %s490
          %s492 = smul.addr %s30, 2
          %s493 = smul.addr %s492, 128
          %s494 = scalar_lea.hbm %s0, %s493
          %s495 = sshll.u32 %s488, 4
          %s496 = int_to_ptr.vmem [resolvable:$true] %s495
          %501 = dma.hbm_to_vmem [thread:$0]  %s494, 256, %s496, %s485, 128, 128, 8
        $region72: #{tpu_custom_call.1} parent=67 // pred_fallthru
          _
      $region68: #{tpu_custom_call.1} parent=5 // pred_fallthru
        _
      %p502 = scmp.le.s32.totalorder 1, %s30
      %p503 = scmp.lt.s32.totalorder %s30, 3
      %p504 = pnand %p502, %p503
      %p505 = pneg %p504
      // Predicated region
      $region73: #{tpu_custom_call.1} parent=5 // pred_check
        _
      $region74: #{tpu_custom_call.1} parent=5 // pred_check_branch
        %507 = sbr.rel (%p504) target = $region76
      $region75: #{tpu_custom_call.1} parent=5 // pred_region
        %s508 = ssub.s32 %s30, 1
        %s509 = sand.u32 %s43, 1
        %s510 = scalar_lea.sflag [#allocation3], %s509
        %s511 = sand.u32 %s43, 1
        %s512 = smul.addr %s511, 16
        %s513 = scalar_lea.vmem [#allocation2], %s512
        // Predicated region
        $region77: #{tpu_custom_call.1} parent=75 // pred_check
          %p514 = pneg %p56
        $region78: #{tpu_custom_call.1} parent=75 // pred_check_branch
          %516 = sbr.rel (%p514) target = $region80
        $region79: #{tpu_custom_call.1} parent=75 // pred_region
          %517 = dma.done %s510, 256
        $region80: #{tpu_custom_call.1} parent=75 // pred_fallthru
          _
        // Predicated region
        $region81: #{tpu_custom_call.1} parent=75 // pred_check
          %p518 = pneg %p98
        $region82: #{tpu_custom_call.1} parent=75 // pred_check_branch
          %520 = sbr.rel (%p518) target = $region84
        $region83: #{tpu_custom_call.1} parent=75 // pred_region
          %521 = dma.done [#allocation6], 16
        $region84: #{tpu_custom_call.1} parent=75 // pred_fallthru
          _
        // Predicated region
        $region85: #{tpu_custom_call.1} parent=75 // pred_check
          %p522 = pneg %p119
        $region86: #{tpu_custom_call.1} parent=75 // pred_check_branch
          %524 = sbr.rel (%p522) target = $region88
        $region87: #{tpu_custom_call.1} parent=75 // pred_region
          %525 = dma.done [#allocation6], 2048
        $region88: #{tpu_custom_call.1} parent=75 // pred_fallthru
          _
        // Predicated region
        $region89: #{tpu_custom_call.1} parent=75 // pred_check
          %p526 = pneg %p140
        $region90: #{tpu_custom_call.1} parent=75 // pred_check_branch
          %528 = sbr.rel (%p526) target = $region92
        $region91: #{tpu_custom_call.1} parent=75 // pred_region
          %529 = dma.done [#allocation9], 2048
        $region92: #{tpu_custom_call.1} parent=75 // pred_fallthru
          _
        // Predicated region
        $region93: #{tpu_custom_call.1} parent=75 // pred_check
          %p530 = pneg %p161
        $region94: #{tpu_custom_call.1} parent=75 // pred_check_branch
          %532 = sbr.rel (%p530) target = $region96
        $region95: #{tpu_custom_call.1} parent=75 // pred_region
          %533 = dma.done [#allocation9], 2048
        $region96: #{tpu_custom_call.1} parent=75 // pred_fallthru
          _
        // Predicated region
        $region97: #{tpu_custom_call.1} parent=75 // pred_check
          %p534 = pneg %p182
        $region98: #{tpu_custom_call.1} parent=75 // pred_check_branch
          %536 = sbr.rel (%p534) target = $region100
        $region99: #{tpu_custom_call.1} parent=75 // pred_region
          %537 = dma.done [#allocation12], 2048
        $region100: #{tpu_custom_call.1} parent=75 // pred_fallthru
          _
        // Predicated region
        $region101: #{tpu_custom_call.1} parent=75 // pred_check
          %p538 = pneg %p266
        $region102: #{tpu_custom_call.1} parent=75 // pred_check_branch
          %540 = sbr.rel (%p538) target = $region104
        $region103: #{tpu_custom_call.1} parent=75 // pred_region
          %541 = dma.done [#allocation12], 4096
        $region104: #{tpu_custom_call.1} parent=75 // pred_fallthru
          _
        // Predicated region
        $region105: #{tpu_custom_call.1} parent=75 // pred_check
          %p542 = pneg %p308
        $region106: #{tpu_custom_call.1} parent=75 // pred_check_branch
          %544 = sbr.rel (%p542) target = $region108
        $region107: #{tpu_custom_call.1} parent=75 // pred_region
          %545 = dma.done [#allocation15], 4096
        $region108: #{tpu_custom_call.1} parent=75 // pred_fallthru
          _
        %s546 = sand.u32 %s43, 1
        %s547 = scalar_lea.sflag [#allocation3], %s546
        %s548 = sand.u32 %s43, 1
        %s549 = smul.addr %s548, 16
        %s550 = scalar_lea.vmem [#allocation2], %s549
        %p551 = pneg %p56
        %p552 = pneg %p53
        %p553 = pneg %p77
        %p554 = pneg %p74
        %p555 = pneg %p98
        %p556 = pneg %p95
        %p557 = pneg %p119
        %p558 = pneg %p116
        %p559 = pneg %p140
        %p560 = pneg %p137
        %p561 = pneg %p161
        %p562 = pneg %p158
        %p563 = pneg %p182
        %p564 = pneg %p179
        %p565 = pneg %p203
        %p566 = pneg %p200
        %p567 = pneg %p224
        %p568 = pneg %p221
        %p569 = pneg %p245
        %p570 = pneg %p242
        %p571 = pneg %p266
        %p572 = pneg %p263
        %p573 = pneg %p287
        %p574 = pneg %p284
        %p575 = pneg %p308
        %p576 = pneg %p305
        %p577 = pneg %p329
        %p578 = pneg %p326
        %p579 = pneg %p355
        %p580 = pneg %p352
        %s581 = sand.u32 %s342, 1
        %s582 = scalar_lea.sflag [#allocation4], %s581
        %s583 = sand.u32 %s342, 1
        %s584 = smul.addr %s583, 16
        %s585 = scalar_lea.vmem [#allocation16], %s584
        %v587 = vld [vmem:[%s513] sm:$0xff]
        %v588 = vld [vmem:[%s513 + $0x8] sm:$0xff]
        %v589 = vld [vmem:[%s1] sm:$0x1]
        %v590 = vld [vmem:[#allocation5] sm:$0x1]
        %591 = vadd.xlane.f32.xlu0 %v587
        %v592 = vpop.xlane.xlu0 %591
        %593 = vadd.xlane.f32.xlu0 %v588
        %v594 = vpop.xlane.xlu0 %593
        %v595 = vrcp.pop 128.0
        %v596 = vmul.f32 %v592, %v595
        %v597 = vmul.f32 %v594, %v595
        %v598 = vsub.f32 %v587, %v596
        %v599 = vsub.f32 %v588, %v597
        %v600 = vmul.f32 %v598, %v598
        %v601 = vmul.f32 %v599, %v599
        %602 = vadd.xlane.f32.xlu0 %v600
        %v603 = vpop.xlane.xlu0 %602
        %604 = vadd.xlane.f32.xlu0 %v601
        %v605 = vpop.xlane.xlu0 %604
        %v606 = vmul.f32 %v603, %v595
        %v607 = vmul.f32 %v605, %v595
        %v608 = vadd.f32 %v606, 1e-06
        %v609 = vadd.f32 %v607, 1e-06
        %v610 = vrsqrt.pop %v608
        %v611 = vrsqrt.pop %v609
        %v612 = vmul.f32 %v598, %v610
        %v613 = vmul.f32 %v599, %v611
        %v615 = vlaneseq
        %v616 = vshrl.u32 %v615, 7
        %v617 = vsub.s32 0, %v616
        %v618 = vrot.slane %v589, %v617
        %v620 = vmul.f32 %v612, %v618
        %v621 = vmul.f32 %v613, %v618
        %v623 = vlaneseq
        %v624 = vshrl.u32 %v623, 7
        %v625 = vsub.s32 0, %v624
        %v626 = vrot.slane %v590, %v625
        %v628 = vadd.f32 %v620, %v626
        %v629 = vadd.f32 %v621, %v626
        %v630 = vpack.c.bf16 %v629, %v628
        %v631 = vld [vmem:[#allocation7] sm:$0xff]
        %v632 = vld [vmem:[#allocation7 + $0x8] sm:$0xff]
        %v633 = vld [vmem:[#allocation7 + $0x10] sm:$0xff]
        %v634 = vld [vmem:[#allocation7 + $0x18] sm:$0xff]
        %v635 = vld [vmem:[#allocation7 + $0x20] sm:$0xff]
        %v636 = vld [vmem:[#allocation7 + $0x28] sm:$0xff]
        %v637 = vld [vmem:[#allocation7 + $0x30] sm:$0xff]
        %v638 = vld [vmem:[#allocation7 + $0x38] sm:$0xff]
        %v639 = vld [vmem:[#allocation7 + $0x40] sm:$0xff]
        %v640 = vld [vmem:[#allocation7 + $0x48] sm:$0xff]
        %v641 = vld [vmem:[#allocation7 + $0x50] sm:$0xff]
        %v642 = vld [vmem:[#allocation7 + $0x58] sm:$0xff]
        %v643 = vld [vmem:[#allocation7 + $0x60] sm:$0xff]
        %v644 = vld [vmem:[#allocation7 + $0x68] sm:$0xff]
        %v645 = vld [vmem:[#allocation7 + $0x70] sm:$0xff]
        %v646 = vld [vmem:[#allocation7 + $0x78] sm:$0xff]
        %v647 = vpack.c.bf16 %v632, %v631
        %v648 = vpack.c.bf16 %v634, %v633
        %v649 = vpack.c.bf16 %v636, %v635
        %v650 = vpack.c.bf16 %v638, %v637
        %v651 = vpack.c.bf16 %v640, %v639
        %v652 = vpack.c.bf16 %v642, %v641
        %v653 = vpack.c.bf16 %v644, %v643
        %v654 = vpack.c.bf16 %v646, %v645
        %655 = vmatprep.subr.bf16.mxu0 0
        %656 = vmatpush1.bf16.msra.mxu0 %v654
        %657 = vmatprep.subr.bf16.mxu0 0
        %658 = vmatpush1.bf16.msra.mxu0 %v653
        %659 = vmatprep.subr.bf16.mxu0 0
        %660 = vmatpush1.bf16.msra.mxu0 %v652
        %661 = vmatprep.subr.bf16.mxu0 0
        %662 = vmatpush1.bf16.msra.mxu0 %v651
        %663 = vmatprep.subr.bf16.mxu0 0
        %664 = vmatpush1.bf16.msra.mxu0 %v650
        %665 = vmatprep.subr.bf16.mxu0 0
        %666 = vmatpush1.bf16.msra.mxu0 %v649
        %667 = vmatprep.subr.bf16.mxu0 0
        %668 = vmatpush1.bf16.msra.mxu0 %v648
        %669 = vmatprep.subr.bf16.mxu0 0
        %670 = vmatpush1.bf16.msra.mxu0 %v647
        %671 = vmatprep.subr.bf16.mxu0 0
        %672 = vmatpush2.bf16.msra.mxu0 0
        %673 = vmatprep.subr.bf16.mxu0 0
        %674 = vmatpush2.bf16.msra.mxu0 0
        %675 = vmatprep.subr.bf16.mxu0 0
        %676 = vmatpush2.bf16.msra.mxu0 0
        %677 = vmatprep.subr.bf16.mxu0 0
        %678 = vmatpush2.bf16.msra.mxu0 0
        %679 = vmatprep.subr.bf16.mxu0 0
        %680 = vmatpush2.bf16.msra.mxu0 0
        %681 = vmatprep.subr.bf16.mxu0 0
        %682 = vmatpush2.bf16.msra.mxu0 0
        %683 = vmatprep.subr.bf16.mxu0 0
        %684 = vmatpush2.bf16.msra.mxu0 0
        %685 = vmatprep.subr.bf16.mxu0 0
        %686 = vmatpush2.bf16.msra.mxu0 0
        %687 = vmatprep.mubr.bf16.mxu0 0
        %688 = vmatmul.mubr.bf16.gmra.mxu0 %v630
        %v689 = vpop.f32.mrf.mxu0
        %v690 = vadd.f32 0.0, %v689
        %v691 = vpop.f32.mrf.mxu0
        %v692 = vpop.f32.mrf.mxu0
        %v693 = vadd.f32 0.0, %v692
        %v694 = vpop.f32.mrf.mxu0
        %695 = vdwg.mxu0
        %v696 = vld [vmem:[#allocation8] sm:$0xff]
        %v697 = vld [vmem:[#allocation8 + $0x8] sm:$0xff]
        %v698 = vld [vmem:[#allocation8 + $0x10] sm:$0xff]
        %v699 = vld [vmem:[#allocation8 + $0x18] sm:$0xff]
        %v700 = vld [vmem:[#allocation8 + $0x20] sm:$0xff]
        %v701 = vld [vmem:[#allocation8 + $0x28] sm:$0xff]
        %v702 = vld [vmem:[#allocation8 + $0x30] sm:$0xff]
        %v703 = vld [vmem:[#allocation8 + $0x38] sm:$0xff]
        %v704 = vld [vmem:[#allocation8 + $0x40] sm:$0xff]
        %v705 = vld [vmem:[#allocation8 + $0x48] sm:$0xff]
        %v706 = vld [vmem:[#allocation8 + $0x50] sm:$0xff]
        %v707 = vld [vmem:[#allocation8 + $0x58] sm:$0xff]
        %v708 = vld [vmem:[#allocation8 + $0x60] sm:$0xff]
        %v709 = vld [vmem:[#allocation8 + $0x68] sm:$0xff]
        %v710 = vld [vmem:[#allocation8 + $0x70] sm:$0xff]
        %v711 = vld [vmem:[#allocation8 + $0x78] sm:$0xff]
        %v712 = vpack.c.bf16 %v697, %v696
        %v713 = vpack.c.bf16 %v699, %v698
        %v714 = vpack.c.bf16 %v701, %v700
        %v715 = vpack.c.bf16 %v703, %v702
        %v716 = vpack.c.bf16 %v705, %v704
        %v717 = vpack.c.bf16 %v707, %v706
        %v718 = vpack.c.bf16 %v709, %v708
        %v719 = vpack.c.bf16 %v711, %v710
        %720 = vmatprep.subr.bf16.mxu0 0
        %721 = vmatpush1.bf16.msra.mxu0 %v719
        %722 = vmatprep.subr.bf16.mxu0 0
        %723 = vmatpush1.bf16.msra.mxu0 %v718
        %724 = vmatprep.subr.bf16.mxu0 0
        %725 = vmatpush1.bf16.msra.mxu0 %v717
        %726 = vmatprep.subr.bf16.mxu0 0
        %727 = vmatpush1.bf16.msra.mxu0 %v716
        %728 = vmatprep.subr.bf16.mxu0 0
        %729 = vmatpush1.bf16.msra.mxu0 %v715
        %730 = vmatprep.subr.bf16.mxu0 0
        %731 = vmatpush1.bf16.msra.mxu0 %v714
        %732 = vmatprep.subr.bf16.mxu0 0
        %733 = vmatpush1.bf16.msra.mxu0 %v713
        %734 = vmatprep.subr.bf16.mxu0 0
        %735 = vmatpush1.bf16.msra.mxu0 %v712
        %736 = vmatprep.subr.bf16.mxu0 0
        %737 = vmatpush2.bf16.msra.mxu0 0
        %738 = vmatprep.subr.bf16.mxu0 0
        %739 = vmatpush2.bf16.msra.mxu0 0
        %740 = vmatprep.subr.bf16.mxu0 0
        %741 = vmatpush2.bf16.msra.mxu0 0
        %742 = vmatprep.subr.bf16.mxu0 0
        %743 = vmatpush2.bf16.msra.mxu0 0
        %744 = vmatprep.subr.bf16.mxu0 0
        %745 = vmatpush2.bf16.msra.mxu0 0
        %746 = vmatprep.subr.bf16.mxu0 0
        %747 = vmatpush2.bf16.msra.mxu0 0
        %748 = vmatprep.subr.bf16.mxu0 0
        %749 = vmatpush2.bf16.msra.mxu0 0
        %750 = vmatprep.subr.bf16.mxu0 0
        %751 = vmatpush2.bf16.msra.mxu0 0
        %752 = vmatprep.mubr.bf16.mxu0 0
        %753 = vmatmul.mubr.bf16.gmra.mxu0 %v630
        %v754 = vpop.f32.mrf.mxu0
        %v755 = vadd.f32 0.0, %v754
        %v756 = vpop.f32.mrf.mxu0
        %v757 = vpop.f32.mrf.mxu0
        %v758 = vadd.f32 0.0, %v757
        %v759 = vpop.f32.mrf.mxu0
        %760 = vdwg.mxu0
        %v761 = vld [vmem:[#allocation10] sm:$0xff]
        %v762 = vld [vmem:[#allocation10 + $0x8] sm:$0xff]
        %v763 = vld [vmem:[#allocation10 + $0x10] sm:$0xff]
        %v764 = vld [vmem:[#allocation10 + $0x18] sm:$0xff]
        %v765 = vld [vmem:[#allocation10 + $0x20] sm:$0xff]
        %v766 = vld [vmem:[#allocation10 + $0x28] sm:$0xff]
        %v767 = vld [vmem:[#allocation10 + $0x30] sm:$0xff]
        %v768 = vld [vmem:[#allocation10 + $0x38] sm:$0xff]
        %v769 = vld [vmem:[#allocation10 + $0x40] sm:$0xff]
        %v770 = vld [vmem:[#allocation10 + $0x48] sm:$0xff]
        %v771 = vld [vmem:[#allocation10 + $0x50] sm:$0xff]
        %v772 = vld [vmem:[#allocation10 + $0x58] sm:$0xff]
        %v773 = vld [vmem:[#allocation10 + $0x60] sm:$0xff]
        %v774 = vld [vmem:[#allocation10 + $0x68] sm:$0xff]
        %v775 = vld [vmem:[#allocation10 + $0x70] sm:$0xff]
        %v776 = vld [vmem:[#allocation10 + $0x78] sm:$0xff]
        %v777 = vpack.c.bf16 %v762, %v761
        %v778 = vpack.c.bf16 %v764, %v763
        %v779 = vpack.c.bf16 %v766, %v765
        %v780 = vpack.c.bf16 %v768, %v767
        %v781 = vpack.c.bf16 %v770, %v769
        %v782 = vpack.c.bf16 %v772, %v771
        %v783 = vpack.c.bf16 %v774, %v773
        %v784 = vpack.c.bf16 %v776, %v775
        %785 = vmatprep.subr.bf16.mxu0 0
        %786 = vmatpush1.bf16.msra.mxu0 %v784
        %787 = vmatprep.subr.bf16.mxu0 0
        %788 = vmatpush1.bf16.msra.mxu0 %v783
        %789 = vmatprep.subr.bf16.mxu0 0
        %790 = vmatpush1.bf16.msra.mxu0 %v782
        %791 = vmatprep.subr.bf16.mxu0 0
        %792 = vmatpush1.bf16.msra.mxu0 %v781
        %793 = vmatprep.subr.bf16.mxu0 0
        %794 = vmatpush1.bf16.msra.mxu0 %v780
        %795 = vmatprep.subr.bf16.mxu0 0
        %796 = vmatpush1.bf16.msra.mxu0 %v779
        %797 = vmatprep.subr.bf16.mxu0 0
        %798 = vmatpush1.bf16.msra.mxu0 %v778
        %799 = vmatprep.subr.bf16.mxu0 0
        %800 = vmatpush1.bf16.msra.mxu0 %v777
        %801 = vmatprep.subr.bf16.mxu0 0
        %802 = vmatpush2.bf16.msra.mxu0 0
        %803 = vmatprep.subr.bf16.mxu0 0
        %804 = vmatpush2.bf16.msra.mxu0 0
        %805 = vmatprep.subr.bf16.mxu0 0
        %806 = vmatpush2.bf16.msra.mxu0 0
        %807 = vmatprep.subr.bf16.mxu0 0
        %808 = vmatpush2.bf16.msra.mxu0 0
        %809 = vmatprep.subr.bf16.mxu0 0
        %810 = vmatpush2.bf16.msra.mxu0 0
        %811 = vmatprep.subr.bf16.mxu0 0
        %812 = vmatpush2.bf16.msra.mxu0 0
        %813 = vmatprep.subr.bf16.mxu0 0
        %814 = vmatpush2.bf16.msra.mxu0 0
        %815 = vmatprep.subr.bf16.mxu0 0
        %816 = vmatpush2.bf16.msra.mxu0 0
        %817 = vmatprep.mubr.bf16.mxu0 0
        %818 = vmatmul.mubr.bf16.gmra.mxu0 %v630
        %v819 = vpop.f32.mrf.mxu0
        %v820 = vadd.f32 0.0, %v819
        %v821 = vpop.f32.mrf.mxu0
        %v822 = vpop.f32.mrf.mxu0
        %v823 = vadd.f32 0.0, %v822
        %v824 = vpop.f32.mrf.mxu0
        %825 = vdwg.mxu0
        %v826 = vpack.c.bf16 %v693, %v690
        %v827 = vpack.c.bf16 %v758, %v755
        %v828 = vpack.c.bf16 %v823, %v820
        %vm829 = vcmask 261120
        %v831 = vsel %vm829, %v826, 0
        %v834 = vsel %vm829, %v827, 0
        %836 = vmatprep.subr.bf16.mxu0 0
        %837 = vmatpush1.bf16.xpose.msra.mxu0 0
        %838 = vmatprep.subr.bf16.mxu0 0
        %839 = vmatpush1.bf16.xpose.msra.mxu0 0
        %840 = vmatprep.subr.bf16.mxu0 0
        %841 = vmatpush1.bf16.xpose.msra.mxu0 0
        %842 = vmatprep.subr.bf16.mxu0 0
        %843 = vmatpush1.bf16.xpose.msra.mxu0 0
        %844 = vmatprep.subr.bf16.mxu0 0
        %845 = vmatpush1.bf16.xpose.msra.mxu0 0
        %846 = vmatprep.subr.bf16.mxu0 0
        %847 = vmatpush1.bf16.xpose.msra.mxu0 0
        %848 = vmatprep.subr.bf16.mxu0 0
        %849 = vmatpush1.bf16.xpose.msra.mxu0 0
        %850 = vmatprep.subr.bf16.mxu0 0
        %851 = vmatpush1.bf16.xpose.msra.mxu0 %v834
        %852 = vmatprep.subr.bf16.mxu0 0
        %853 = vmatpush2.bf16.xpose.msra.mxu0 0
        %854 = vmatprep.subr.bf16.mxu0 0
        %855 = vmatpush2.bf16.xpose.msra.mxu0 0
        %856 = vmatprep.subr.bf16.mxu0 0
        %857 = vmatpush2.bf16.xpose.msra.mxu0 0
        %858 = vmatprep.subr.bf16.mxu0 0
        %859 = vmatpush2.bf16.xpose.msra.mxu0 0
        %860 = vmatprep.subr.bf16.mxu0 0
        %861 = vmatpush2.bf16.xpose.msra.mxu0 0
        %862 = vmatprep.subr.bf16.mxu0 0
        %863 = vmatpush2.bf16.xpose.msra.mxu0 0
        %864 = vmatprep.subr.bf16.mxu0 0
        %865 = vmatpush2.bf16.xpose.msra.mxu0 0
        %866 = vmatprep.subr.bf16.mxu0 0
        %867 = vmatpush2.bf16.xpose.msra.mxu0 0
        %868 = vmatprep.mubr.bf16.mxu0 0
        %869 = vmatmul.mubr.bf16.gmra.mxu0 %v831
        %v870 = vpop.f32.mrf.mxu0
        %v871 = vadd.f32 0.0, %v870
        %v872 = vpop.f32.mrf.mxu0
        %v873 = vpop.f32.mrf.mxu0
        %v874 = vadd.f32 0.0, %v873
        %v875 = vpop.f32.mrf.mxu0
        %876 = vdwg.mxu0
        %v877 = vmul.f32 %v871, 0.17677669
        %v878 = vmul.f32 %v874, 0.17677669
        %vm879 = vcmask 130048
        %v880 = vsel %vm879, %v877, -inf
        %881 = vmax.xlane.f32.xlu0 %v880
        %v882 = vpop.xlane.xlu0 %881
        %v883 = vsel %vm879, %v878, -inf
        %884 = vmax.xlane.f32.xlu0 %v883
        %v885 = vpop.xlane.xlu0 %884
        %v886 = vsub.f32 %v877, %v882
        %v887 = vsub.f32 %v878, %v885
        %v888 = vmul.f32 %v886, 1.442695
        %v889 = vpow.pop %v888
        %v890 = vmul.f32 %v887, 1.442695
        %v891 = vpow.pop %v890
        %v892 = vsel %vm879, %v889, 0.0
        %893 = vadd.xlane.f32.xlu0 %v892
        %v894 = vpop.xlane.xlu0 %893
        %v895 = vsel %vm879, %v891, 0.0
        %896 = vadd.xlane.f32.xlu0 %v895
        %v897 = vpop.xlane.xlu0 %896
        %v898 = vrcp.pop %v894
        %v899 = vrcp.pop %v897
        %v900 = vmul.f32 %v889, %v898
        %v901 = vmul.f32 %v891, %v899
        %v902 = vpack.c.bf16 %v901, %v900
        %v904 = vsel %vm879, %v902, 0
        %906 = vmatprep.subr.bf16.mxu0 0
        %907 = vmatpush1.bf16.msra.mxu0 0
        %908 = vmatprep.subr.bf16.mxu0 0
        %909 = vmatpush1.bf16.msra.mxu0 0
        %910 = vmatprep.subr.bf16.mxu0 0
        %911 = vmatpush1.bf16.msra.mxu0 0
        %912 = vmatprep.subr.bf16.mxu0 0
        %913 = vmatpush1.bf16.msra.mxu0 0
        %914 = vmatprep.subr.bf16.mxu0 0
        %915 = vmatpush1.bf16.msra.mxu0 0
        %916 = vmatprep.subr.bf16.mxu0 0
        %917 = vmatpush1.bf16.msra.mxu0 0
        %918 = vmatprep.subr.bf16.mxu0 0
        %919 = vmatpush1.bf16.msra.mxu0 0
        %920 = vmatprep.subr.bf16.mxu0 0
        %921 = vmatpush1.bf16.msra.mxu0 %v828
        %922 = vmatprep.subr.bf16.mxu0 0
        %923 = vmatpush2.bf16.msra.mxu0 0
        %924 = vmatprep.subr.bf16.mxu0 0
        %925 = vmatpush2.bf16.msra.mxu0 0
        %926 = vmatprep.subr.bf16.mxu0 0
        %927 = vmatpush2.bf16.msra.mxu0 0
        %928 = vmatprep.subr.bf16.mxu0 0
        %929 = vmatpush2.bf16.msra.mxu0 0
        %930 = vmatprep.subr.bf16.mxu0 0
        %931 = vmatpush2.bf16.msra.mxu0 0
        %932 = vmatprep.subr.bf16.mxu0 0
        %933 = vmatpush2.bf16.msra.mxu0 0
        %934 = vmatprep.subr.bf16.mxu0 0
        %935 = vmatpush2.bf16.msra.mxu0 0
        %936 = vmatprep.subr.bf16.mxu0 0
        %937 = vmatpush2.bf16.msra.mxu0 0
        %938 = vmatprep.mubr.bf16.mxu0 0
        %939 = vmatmul.mubr.bf16.gmra.mxu0 %v904
        %v940 = vpop.f32.mrf.mxu0
        %v941 = vadd.f32 0.0, %v940
        %v942 = vpop.f32.mrf.mxu0
        %v943 = vpop.f32.mrf.mxu0
        %v944 = vadd.f32 0.0, %v943
        %v945 = vpop.f32.mrf.mxu0
        %946 = vdwg.mxu0
        %948 = vrot.lane.b32.xlu0 %v826, 96
        %v949 = vpop.permute.xlu0 %948
        %951 = vrot.lane.b32.xlu0 %v827, 96
        %v952 = vpop.permute.xlu0 %951
        %v954 = vsel %vm829, %v949, 0
        %v957 = vsel %vm829, %v952, 0
        %959 = vmatprep.subr.bf16.mxu0 0
        %960 = vmatpush1.bf16.xpose.msra.mxu0 0
        %961 = vmatprep.subr.bf16.mxu0 0
        %962 = vmatpush1.bf16.xpose.msra.mxu0 0
        %963 = vmatprep.subr.bf16.mxu0 0
        %964 = vmatpush1.bf16.xpose.msra.mxu0 0
        %965 = vmatprep.subr.bf16.mxu0 0
        %966 = vmatpush1.bf16.xpose.msra.mxu0 0
        %967 = vmatprep.subr.bf16.mxu0 0
        %968 = vmatpush1.bf16.xpose.msra.mxu0 0
        %969 = vmatprep.subr.bf16.mxu0 0
        %970 = vmatpush1.bf16.xpose.msra.mxu0 0
        %971 = vmatprep.subr.bf16.mxu0 0
        %972 = vmatpush1.bf16.xpose.msra.mxu0 0
        %973 = vmatprep.subr.bf16.mxu0 0
        %974 = vmatpush1.bf16.xpose.msra.mxu0 %v957
        %975 = vmatprep.subr.bf16.mxu0 0
        %976 = vmatpush2.bf16.xpose.msra.mxu0 0
        %977 = vmatprep.subr.bf16.mxu0 0
        %978 = vmatpush2.bf16.xpose.msra.mxu0 0
        %979 = vmatprep.subr.bf16.mxu0 0
        %980 = vmatpush2.bf16.xpose.msra.mxu0 0
        %981 = vmatprep.subr.bf16.mxu0 0
        %982 = vmatpush2.bf16.xpose.msra.mxu0 0
        %983 = vmatprep.subr.bf16.mxu0 0
        %984 = vmatpush2.bf16.xpose.msra.mxu0 0
        %985 = vmatprep.subr.bf16.mxu0 0
        %986 = vmatpush2.bf16.xpose.msra.mxu0 0
        %987 = vmatprep.subr.bf16.mxu0 0
        %988 = vmatpush2.bf16.xpose.msra.mxu0 0
        %989 = vmatprep.subr.bf16.mxu0 0
        %990 = vmatpush2.bf16.xpose.msra.mxu0 0
        %991 = vmatprep.mubr.bf16.mxu0 0
        %992 = vmatmul.mubr.bf16.gmra.mxu0 %v954
        %v993 = vpop.f32.mrf.mxu0
        %v994 = vadd.f32 0.0, %v993
        %v995 = vpop.f32.mrf.mxu0
        %v996 = vpop.f32.mrf.mxu0
        %v997 = vadd.f32 0.0, %v996
        %v998 = vpop.f32.mrf.mxu0
        %999 = vdwg.mxu0
        %v1000 = vmul.f32 %v994, 0.17677669
        %v1001 = vmul.f32 %v997, 0.17677669
        %v1002 = vsel %vm879, %v1000, -inf
        %1003 = vmax.xlane.f32.xlu0 %v1002
        %v1004 = vpop.xlane.xlu0 %1003
        %v1005 = vsel %vm879, %v1001, -inf
        %1006 = vmax.xlane.f32.xlu0 %v1005
        %v1007 = vpop.xlane.xlu0 %1006
        %v1008 = vsub.f32 %v1000, %v1004
        %v1009 = vsub.f32 %v1001, %v1007
        %v1010 = vmul.f32 %v1008, 1.442695
        %v1011 = vpow.pop %v1010
        %v1012 = vmul.f32 %v1009, 1.442695
        %v1013 = vpow.pop %v1012
        %v1014 = vsel %vm879, %v1011, 0.0
        %1015 = vadd.xlane.f32.xlu0 %v1014
        %v1016 = vpop.xlane.xlu0 %1015
        %v1017 = vsel %vm879, %v1013, 0.0
        %1018 = vadd.xlane.f32.xlu0 %v1017
        %v1019 = vpop.xlane.xlu0 %1018
        %v1020 = vrcp.pop %v1016
        %v1021 = vrcp.pop %v1019
        %v1022 = vmul.f32 %v1011, %v1020
        %v1023 = vmul.f32 %v1013, %v1021
        %v1024 = vpack.c.bf16 %v1023, %v1022
        %1026 = vrot.lane.b32.xlu0 %v828, 96
        %v1027 = vpop.permute.xlu0 %1026
        %v1030 = vsel %vm879, %v1024, 0
        %1032 = vmatprep.subr.bf16.mxu0 0
        %1033 = vmatpush1.bf16.msra.mxu0 0
        %1034 = vmatprep.subr.bf16.mxu0 0
        %1035 = vmatpush1.bf16.msra.mxu0 0
        %1036 = vmatprep.subr.bf16.mxu0 0
        %1037 = vmatpush1.bf16.msra.mxu0 0
        %1038 = vmatprep.subr.bf16.mxu0 0
        %1039 = vmatpush1.bf16.msra.mxu0 0
        %1040 = vmatprep.subr.bf16.mxu0 0
        %1041 = vmatpush1.bf16.msra.mxu0 0
        %1042 = vmatprep.subr.bf16.mxu0 0
        %1043 = vmatpush1.bf16.msra.mxu0 0
        %1044 = vmatprep.subr.bf16.mxu0 0
        %1045 = vmatpush1.bf16.msra.mxu0 0
        %1046 = vmatprep.subr.bf16.mxu0 0
        %1047 = vmatpush1.bf16.msra.mxu0 %v1027
        %1048 = vmatprep.subr.bf16.mxu0 0
        %1049 = vmatpush2.bf16.msra.mxu0 0
        %1050 = vmatprep.subr.bf16.mxu0 0
        %1051 = vmatpush2.bf16.msra.mxu0 0
        %1052 = vmatprep.subr.bf16.mxu0 0
        %1053 = vmatpush2.bf16.msra.mxu0 0
        %1054 = vmatprep.subr.bf16.mxu0 0
        %1055 = vmatpush2.bf16.msra.mxu0 0
        %1056 = vmatprep.subr.bf16.mxu0 0
        %1057 = vmatpush2.bf16.msra.mxu0 0
        %1058 = vmatprep.subr.bf16.mxu0 0
        %1059 = vmatpush2.bf16.msra.mxu0 0
        %1060 = vmatprep.subr.bf16.mxu0 0
        %1061 = vmatpush2.bf16.msra.mxu0 0
        %1062 = vmatprep.subr.bf16.mxu0 0
        %1063 = vmatpush2.bf16.msra.mxu0 0
        %1064 = vmatprep.mubr.bf16.mxu0 0
        %1065 = vmatmul.mubr.bf16.gmra.mxu0 %v1030
        %v1066 = vpop.f32.mrf.mxu0
        %v1067 = vadd.f32 0.0, %v1066
        %v1068 = vpop.f32.mrf.mxu0
        %v1069 = vpop.f32.mrf.mxu0
        %v1070 = vadd.f32 0.0, %v1069
        %v1071 = vpop.f32.mrf.mxu0
        %1072 = vdwg.mxu0
        %1073 = vrot.lane.b32.xlu0 %v826, 64
        %v1074 = vpop.permute.xlu0 %1073
        %1075 = vrot.lane.b32.xlu0 %v827, 64
        %v1076 = vpop.permute.xlu0 %1075
        %v1078 = vsel %vm829, %v1074, 0
        %v1081 = vsel %vm829, %v1076, 0
        %1083 = vmatprep.subr.bf16.mxu0 0
        %1084 = vmatpush1.bf16.xpose.msra.mxu0 0
        %1085 = vmatprep.subr.bf16.mxu0 0
        %1086 = vmatpush1.bf16.xpose.msra.mxu0 0
        %1087 = vmatprep.subr.bf16.mxu0 0
        %1088 = vmatpush1.bf16.xpose.msra.mxu0 0
        %1089 = vmatprep.subr.bf16.mxu0 0
        %1090 = vmatpush1.bf16.xpose.msra.mxu0 0
        %1091 = vmatprep.subr.bf16.mxu0 0
        %1092 = vmatpush1.bf16.xpose.msra.mxu0 0
        %1093 = vmatprep.subr.bf16.mxu0 0
        %1094 = vmatpush1.bf16.xpose.msra.mxu0 0
        %1095 = vmatprep.subr.bf16.mxu0 0
        %1096 = vmatpush1.bf16.xpose.msra.mxu0 0
        %1097 = vmatprep.subr.bf16.mxu0 0
        %1098 = vmatpush1.bf16.xpose.msra.mxu0 %v1081
        %1099 = vmatprep.subr.bf16.mxu0 0
        %1100 = vmatpush2.bf16.xpose.msra.mxu0 0
        %1101 = vmatprep.subr.bf16.mxu0 0
        %1102 = vmatpush2.bf16.xpose.msra.mxu0 0
        %1103 = vmatprep.subr.bf16.mxu0 0
        %1104 = vmatpush2.bf16.xpose.msra.mxu0 0
        %1105 = vmatprep.subr.bf16.mxu0 0
        %1106 = vmatpush2.bf16.xpose.msra.mxu0 0
        %1107 = vmatprep.subr.bf16.mxu0 0
        %1108 = vmatpush2.bf16.xpose.msra.mxu0 0
        %1109 = vmatprep.subr.bf16.mxu0 0
        %1110 = vmatpush2.bf16.xpose.msra.mxu0 0
        %1111 = vmatprep.subr.bf16.mxu0 0
        %1112 = vmatpush2.bf16.xpose.msra.mxu0 0
        %1113 = vmatprep.subr.bf16.mxu0 0
        %1114 = vmatpush2.bf16.xpose.msra.mxu0 0
        %1115 = vmatprep.mubr.bf16.mxu0 0
        %1116 = vmatmul.mubr.bf16.gmra.mxu0 %v1078
        %v1117 = vpop.f32.mrf.mxu0
        %v1118 = vadd.f32 0.0, %v1117
        %v1119 = vpop.f32.mrf.mxu0
        %v1120 = vpop.f32.mrf.mxu0
        %v1121 = vadd.f32 0.0, %v1120
        %v1122 = vpop.f32.mrf.mxu0
        %1123 = vdwg.mxu0
        %v1124 = vmul.f32 %v1118, 0.17677669
        %v1125 = vmul.f32 %v1121, 0.17677669
        %v1126 = vsel %vm879, %v1124, -inf
        %1127 = vmax.xlane.f32.xlu0 %v1126
        %v1128 = vpop.xlane.xlu0 %1127
        %v1129 = vsel %vm879, %v1125, -inf
        %1130 = vmax.xlane.f32.xlu0 %v1129
        %v1131 = vpop.xlane.xlu0 %1130
        %v1132 = vsub.f32 %v1124, %v1128
        %v1133 = vsub.f32 %v1125, %v1131
        %v1134 = vmul.f32 %v1132, 1.442695
        %v1135 = vpow.pop %v1134
        %v1136 = vmul.f32 %v1133, 1.442695
        %v1137 = vpow.pop %v1136
        %v1138 = vsel %vm879, %v1135, 0.0
        %1139 = vadd.xlane.f32.xlu0 %v1138
        %v1140 = vpop.xlane.xlu0 %1139
        %v1141 = vsel %vm879, %v1137, 0.0
        %1142 = vadd.xlane.f32.xlu0 %v1141
        %v1143 = vpop.xlane.xlu0 %1142
        %v1144 = vrcp.pop %v1140
        %v1145 = vrcp.pop %v1143
        %v1146 = vmul.f32 %v1135, %v1144
        %v1147 = vmul.f32 %v1137, %v1145
        %v1148 = vpack.c.bf16 %v1147, %v1146
        %1149 = vrot.lane.b32.xlu0 %v828, 64
        %v1150 = vpop.permute.xlu0 %1149
        %v1153 = vsel %vm879, %v1148, 0
        %1155 = vmatprep.subr.bf16.mxu0 0
        %1156 = vmatpush1.bf16.msra.mxu0 0
        %1157 = vmatprep.subr.bf16.mxu0 0
        %1158 = vmatpush1.bf16.msra.mxu0 0
        %1159 = vmatprep.subr.bf16.mxu0 0
        %1160 = vmatpush1.bf16.msra.mxu0 0
        %1161 = vmatprep.subr.bf16.mxu0 0
        %1162 = vmatpush1.bf16.msra.mxu0 0
        %1163 = vmatprep.subr.bf16.mxu0 0
        %1164 = vmatpush1.bf16.msra.mxu0 0
        %1165 = vmatprep.subr.bf16.mxu0 0
        %1166 = vmatpush1.bf16.msra.mxu0 0
        %1167 = vmatprep.subr.bf16.mxu0 0
        %1168 = vmatpush1.bf16.msra.mxu0 0
        %1169 = vmatprep.subr.bf16.mxu0 0
        %1170 = vmatpush1.bf16.msra.mxu0 %v1150
        %1171 = vmatprep.subr.bf16.mxu0 0
        %1172 = vmatpush2.bf16.msra.mxu0 0
        %1173 = vmatprep.subr.bf16.mxu0 0
        %1174 = vmatpush2.bf16.msra.mxu0 0
        %1175 = vmatprep.subr.bf16.mxu0 0
        %1176 = vmatpush2.bf16.msra.mxu0 0
        %1177 = vmatprep.subr.bf16.mxu0 0
        %1178 = vmatpush2.bf16.msra.mxu0 0
        %1179 = vmatprep.subr.bf16.mxu0 0
        %1180 = vmatpush2.bf16.msra.mxu0 0
        %1181 = vmatprep.subr.bf16.mxu0 0
        %1182 = vmatpush2.bf16.msra.mxu0 0
        %1183 = vmatprep.subr.bf16.mxu0 0
        %1184 = vmatpush2.bf16.msra.mxu0 0
        %1185 = vmatprep.subr.bf16.mxu0 0
        %1186 = vmatpush2.bf16.msra.mxu0 0
        %1187 = vmatprep.mubr.bf16.mxu0 0
        %1188 = vmatmul.mubr.bf16.gmra.mxu0 %v1153
        %v1189 = vpop.f32.mrf.mxu0
        %v1190 = vadd.f32 0.0, %v1189
        %v1191 = vpop.f32.mrf.mxu0
        %v1192 = vpop.f32.mrf.mxu0
        %v1193 = vadd.f32 0.0, %v1192
        %v1194 = vpop.f32.mrf.mxu0
        %1195 = vdwg.mxu0
        %1196 = vrot.lane.b32.xlu0 %v826, 32
        %v1197 = vpop.permute.xlu0 %1196
        %1198 = vrot.lane.b32.xlu0 %v827, 32
        %v1199 = vpop.permute.xlu0 %1198
        %v1201 = vsel %vm829, %v1197, 0
        %v1204 = vsel %vm829, %v1199, 0
        %1206 = vmatprep.subr.bf16.mxu0 0
        %1207 = vmatpush1.bf16.xpose.msra.mxu0 0
        %1208 = vmatprep.subr.bf16.mxu0 0
        %1209 = vmatpush1.bf16.xpose.msra.mxu0 0
        %1210 = vmatprep.subr.bf16.mxu0 0
        %1211 = vmatpush1.bf16.xpose.msra.mxu0 0
        %1212 = vmatprep.subr.bf16.mxu0 0
        %1213 = vmatpush1.bf16.xpose.msra.mxu0 0
        %1214 = vmatprep.subr.bf16.mxu0 0
        %1215 = vmatpush1.bf16.xpose.msra.mxu0 0
        %1216 = vmatprep.subr.bf16.mxu0 0
        %1217 = vmatpush1.bf16.xpose.msra.mxu0 0
        %1218 = vmatprep.subr.bf16.mxu0 0
        %1219 = vmatpush1.bf16.xpose.msra.mxu0 0
        %1220 = vmatprep.subr.bf16.mxu0 0
        %1221 = vmatpush1.bf16.xpose.msra.mxu0 %v1204
        %1222 = vmatprep.subr.bf16.mxu0 0
        %1223 = vmatpush2.bf16.xpose.msra.mxu0 0
        %1224 = vmatprep.subr.bf16.mxu0 0
        %1225 = vmatpush2.bf16.xpose.msra.mxu0 0
        %1226 = vmatprep.subr.bf16.mxu0 0
        %1227 = vmatpush2.bf16.xpose.msra.mxu0 0
        %1228 = vmatprep.subr.bf16.mxu0 0
        %1229 = vmatpush2.bf16.xpose.msra.mxu0 0
        %1230 = vmatprep.subr.bf16.mxu0 0
        %1231 = vmatpush2.bf16.xpose.msra.mxu0 0
        %1232 = vmatprep.subr.bf16.mxu0 0
        %1233 = vmatpush2.bf16.xpose.msra.mxu0 0
        %1234 = vmatprep.subr.bf16.mxu0 0
        %1235 = vmatpush2.bf16.xpose.msra.mxu0 0
        %1236 = vmatprep.subr.bf16.mxu0 0
        %1237 = vmatpush2.bf16.xpose.msra.mxu0 0
        %1238 = vmatprep.mubr.bf16.mxu0 0
        %1239 = vmatmul.mubr.bf16.gmra.mxu0 %v1201
        %v1240 = vpop.f32.mrf.mxu0
        %v1241 = vadd.f32 0.0, %v1240
        %v1242 = vpop.f32.mrf.mxu0
        %v1243 = vpop.f32.mrf.mxu0
        %v1244 = vadd.f32 0.0, %v1243
        %v1245 = vpop.f32.mrf.mxu0
        %1246 = vdwg.mxu0
        %v1247 = vmul.f32 %v1241, 0.17677669
        %v1248 = vmul.f32 %v1244, 0.17677669
        %v1249 = vsel %vm879, %v1247, -inf
        %1250 = vmax.xlane.f32.xlu0 %v1249
        %v1251 = vpop.xlane.xlu0 %1250
        %v1252 = vsel %vm879, %v1248, -inf
        %1253 = vmax.xlane.f32.xlu0 %v1252
        %v1254 = vpop.xlane.xlu0 %1253
        %v1255 = vsub.f32 %v1247, %v1251
        %v1256 = vsub.f32 %v1248, %v1254
        %v1257 = vmul.f32 %v1255, 1.442695
        %v1258 = vpow.pop %v1257
        %v1259 = vmul.f32 %v1256, 1.442695
        %v1260 = vpow.pop %v1259
        %v1261 = vsel %vm879, %v1258, 0.0
        %1262 = vadd.xlane.f32.xlu0 %v1261
        %v1263 = vpop.xlane.xlu0 %1262
        %v1264 = vsel %vm879, %v1260, 0.0
        %1265 = vadd.xlane.f32.xlu0 %v1264
        %v1266 = vpop.xlane.xlu0 %1265
        %v1267 = vrcp.pop %v1263
        %v1268 = vrcp.pop %v1266
        %v1269 = vmul.f32 %v1258, %v1267
        %v1270 = vmul.f32 %v1260, %v1268
        %v1271 = vpack.c.bf16 %v1270, %v1269
        %1272 = vrot.lane.b32.xlu0 %v828, 32
        %v1273 = vpop.permute.xlu0 %1272
        %v1276 = vsel %vm879, %v1271, 0
        %1278 = vmatprep.subr.bf16.mxu0 0
        %1279 = vmatpush1.bf16.msra.mxu0 0
        %1280 = vmatprep.subr.bf16.mxu0 0
        %1281 = vmatpush1.bf16.msra.mxu0 0
        %1282 = vmatprep.subr.bf16.mxu0 0
        %1283 = vmatpush1.bf16.msra.mxu0 0
        %1284 = vmatprep.subr.bf16.mxu0 0
        %1285 = vmatpush1.bf16.msra.mxu0 0
        %1286 = vmatprep.subr.bf16.mxu0 0
        %1287 = vmatpush1.bf16.msra.mxu0 0
        %1288 = vmatprep.subr.bf16.mxu0 0
        %1289 = vmatpush1.bf16.msra.mxu0 0
        %1290 = vmatprep.subr.bf16.mxu0 0
        %1291 = vmatpush1.bf16.msra.mxu0 0
        %1292 = vmatprep.subr.bf16.mxu0 0
        %1293 = vmatpush1.bf16.msra.mxu0 %v1273
        %1294 = vmatprep.subr.bf16.mxu0 0
        %1295 = vmatpush2.bf16.msra.mxu0 0
        %1296 = vmatprep.subr.bf16.mxu0 0
        %1297 = vmatpush2.bf16.msra.mxu0 0
        %1298 = vmatprep.subr.bf16.mxu0 0
        %1299 = vmatpush2.bf16.msra.mxu0 0
        %1300 = vmatprep.subr.bf16.mxu0 0
        %1301 = vmatpush2.bf16.msra.mxu0 0
        %1302 = vmatprep.subr.bf16.mxu0 0
        %1303 = vmatpush2.bf16.msra.mxu0 0
        %1304 = vmatprep.subr.bf16.mxu0 0
        %1305 = vmatpush2.bf16.msra.mxu0 0
        %1306 = vmatprep.subr.bf16.mxu0 0
        %1307 = vmatpush2.bf16.msra.mxu0 0
        %1308 = vmatprep.subr.bf16.mxu0 0
        %1309 = vmatpush2.bf16.msra.mxu0 0
        %1310 = vmatprep.mubr.bf16.mxu0 0
        %1311 = vmatmul.mubr.bf16.gmra.mxu0 %v1276
        %v1312 = vpop.f32.mrf.mxu0
        %v1313 = vadd.f32 0.0, %v1312
        %v1314 = vpop.f32.mrf.mxu0
        %v1315 = vpop.f32.mrf.mxu0
        %v1316 = vadd.f32 0.0, %v1315
        %v1317 = vpop.f32.mrf.mxu0
        %1318 = vdwg.mxu0
        %1321 = vrot.lane.b32.xlu0 %v1067, 32
        %v1322 = vpop.permute.xlu0 %1321
        %1323 = vrot.lane.b32.xlu0 %v1070, 32
        %v1324 = vpop.permute.xlu0 %1323
        %1329 = vrot.lane.b32.xlu0 %v1190, 64
        %v1330 = vpop.permute.xlu0 %1329
        %1331 = vrot.lane.b32.xlu0 %v1193, 64
        %v1332 = vpop.permute.xlu0 %1331
        %1337 = vrot.lane.b32.xlu0 %v1313, 96
        %v1338 = vpop.permute.xlu0 %1337
        %1339 = vrot.lane.b32.xlu0 %v1316, 96
        %v1340 = vpop.permute.xlu0 %1339
        %v1343 = vsel %vm829, %v941, %v1322
        %v1344 = vsel %vm829, %v944, %v1324
        %vm1345 = vcmask 523264
        %v1346 = vsel %vm1345, %v1343, %v1330
        %v1347 = vsel %vm1345, %v1344, %v1332
        %vm1348 = vcmask 785408
        %v1349 = vsel %vm1348, %v1346, %v1338
        %v1350 = vsel %vm1348, %v1347, %v1340
        %v1351 = vpack.c.bf16 %v1350, %v1349
        %v1352 = vld [vmem:[#allocation11] sm:$0xff]
        %v1353 = vld [vmem:[#allocation11 + $0x8] sm:$0xff]
        %v1354 = vld [vmem:[#allocation11 + $0x10] sm:$0xff]
        %v1355 = vld [vmem:[#allocation11 + $0x18] sm:$0xff]
        %v1356 = vld [vmem:[#allocation11 + $0x20] sm:$0xff]
        %v1357 = vld [vmem:[#allocation11 + $0x28] sm:$0xff]
        %v1358 = vld [vmem:[#allocation11 + $0x30] sm:$0xff]
        %v1359 = vld [vmem:[#allocation11 + $0x38] sm:$0xff]
        %v1360 = vld [vmem:[#allocation11 + $0x40] sm:$0xff]
        %v1361 = vld [vmem:[#allocation11 + $0x48] sm:$0xff]
        %v1362 = vld [vmem:[#allocation11 + $0x50] sm:$0xff]
        %v1363 = vld [vmem:[#allocation11 + $0x58] sm:$0xff]
        %v1364 = vld [vmem:[#allocation11 + $0x60] sm:$0xff]
        %v1365 = vld [vmem:[#allocation11 + $0x68] sm:$0xff]
        %v1366 = vld [vmem:[#allocation11 + $0x70] sm:$0xff]
        %v1367 = vld [vmem:[#allocation11 + $0x78] sm:$0xff]
        %v1368 = vpack.c.bf16 %v1353, %v1352
        %v1369 = vpack.c.bf16 %v1355, %v1354
        %v1370 = vpack.c.bf16 %v1357, %v1356
        %v1371 = vpack.c.bf16 %v1359, %v1358
        %v1372 = vpack.c.bf16 %v1361, %v1360
        %v1373 = vpack.c.bf16 %v1363, %v1362
        %v1374 = vpack.c.bf16 %v1365, %v1364
        %v1375 = vpack.c.bf16 %v1367, %v1366
        %v1376 = vld [vmem:[%s7] sm:$0x1]
        %v1378 = vlaneseq
        %v1379 = vshrl.u32 %v1378, 7
        %v1380 = vsub.s32 0, %v1379
        %v1381 = vrot.slane %v1376, %v1380
        %1383 = vmatprep.subr.bf16.mxu0 0
        %1384 = vmatpush1.bf16.msra.mxu0 %v1375
        %1385 = vmatprep.subr.bf16.mxu0 0
        %1386 = vmatpush1.bf16.msra.mxu0 %v1374
        %1387 = vmatprep.subr.bf16.mxu0 0
        %1388 = vmatpush1.bf16.msra.mxu0 %v1373
        %1389 = vmatprep.subr.bf16.mxu0 0
        %1390 = vmatpush1.bf16.msra.mxu0 %v1372
        %1391 = vmatprep.subr.bf16.mxu0 0
        %1392 = vmatpush1.bf16.msra.mxu0 %v1371
        %1393 = vmatprep.subr.bf16.mxu0 0
        %1394 = vmatpush1.bf16.msra.mxu0 %v1370
        %1395 = vmatprep.subr.bf16.mxu0 0
        %1396 = vmatpush1.bf16.msra.mxu0 %v1369
        %1397 = vmatprep.subr.bf16.mxu0 0
        %1398 = vmatpush1.bf16.msra.mxu0 %v1368
        %1399 = vmatprep.subr.bf16.mxu0 0
        %1400 = vmatpush2.bf16.msra.mxu0 0
        %1401 = vmatprep.subr.bf16.mxu0 0
        %1402 = vmatpush2.bf16.msra.mxu0 0
        %1403 = vmatprep.subr.bf16.mxu0 0
        %1404 = vmatpush2.bf16.msra.mxu0 0
        %1405 = vmatprep.subr.bf16.mxu0 0
        %1406 = vmatpush2.bf16.msra.mxu0 0
        %1407 = vmatprep.subr.bf16.mxu0 0
        %1408 = vmatpush2.bf16.msra.mxu0 0
        %1409 = vmatprep.subr.bf16.mxu0 0
        %1410 = vmatpush2.bf16.msra.mxu0 0
        %1411 = vmatprep.subr.bf16.mxu0 0
        %1412 = vmatpush2.bf16.msra.mxu0 0
        %1413 = vmatprep.subr.bf16.mxu0 0
        %1414 = vmatpush2.bf16.msra.mxu0 0
        %1415 = vmatprep.mubr.bf16.mxu0 0
        %1416 = vmatmul.mubr.bf16.gmra.mxu0 %v1351
        %v1417 = vpop.f32.mrf.mxu0
        %v1418 = vadd.f32 %v1381, %v1417
        %v1419 = vpop.f32.mrf.mxu0
        %v1420 = vpop.f32.mrf.mxu0
        %v1421 = vadd.f32 %v1381, %v1420
        %v1422 = vpop.f32.mrf.mxu0
        %1423 = vdwg.mxu0
        %v1424 = vadd.f32 %v1418, %v587
        %v1425 = vadd.f32 %v1421, %v588
        %v1426 = vld [vmem:[%s8] sm:$0x1]
        %v1427 = vld [vmem:[%s9] sm:$0x1]
        %1428 = vadd.xlane.f32.xlu0 %v1424
        %v1429 = vpop.xlane.xlu0 %1428
        %1430 = vadd.xlane.f32.xlu0 %v1425
        %v1431 = vpop.xlane.xlu0 %1430
        %v1432 = vmul.f32 %v1429, %v595
        %v1433 = vmul.f32 %v1431, %v595
        %v1434 = vsub.f32 %v1424, %v1432
        %v1435 = vsub.f32 %v1425, %v1433
        %v1436 = vmul.f32 %v1434, %v1434
        %v1437 = vmul.f32 %v1435, %v1435
        %1438 = vadd.xlane.f32.xlu0 %v1436
        %v1439 = vpop.xlane.xlu0 %1438
        %1440 = vadd.xlane.f32.xlu0 %v1437
        %v1441 = vpop.xlane.xlu0 %1440
        %v1442 = vmul.f32 %v1439, %v595
        %v1443 = vmul.f32 %v1441, %v595
        %v1444 = vadd.f32 %v1442, 1e-06
        %v1445 = vadd.f32 %v1443, 1e-06
        %v1446 = vrsqrt.pop %v1444
        %v1447 = vrsqrt.pop %v1445
        %v1448 = vmul.f32 %v1434, %v1446
        %v1449 = vmul.f32 %v1435, %v1447
        %v1451 = vlaneseq
        %v1452 = vshrl.u32 %v1451, 7
        %v1453 = vsub.s32 0, %v1452
        %v1454 = vrot.slane %v1426, %v1453
        %v1456 = vmul.f32 %v1448, %v1454
        %v1457 = vmul.f32 %v1449, %v1454
        %v1459 = vlaneseq
        %v1460 = vshrl.u32 %v1459, 7
        %v1461 = vsub.s32 0, %v1460
        %v1462 = vrot.slane %v1427, %v1461
        %v1464 = vadd.f32 %v1456, %v1462
        %v1465 = vadd.f32 %v1457, %v1462
        %v1466 = vpack.c.bf16 %v1465, %v1464
        %v1467 = vld [vmem:[#allocation13] sm:$0xff]
        %v1468 = vld [vmem:[#allocation13 + $0x8] sm:$0xff]
        %v1469 = vld [vmem:[#allocation13 + $0x10] sm:$0xff]
        %v1470 = vld [vmem:[#allocation13 + $0x18] sm:$0xff]
        %v1471 = vld [vmem:[#allocation13 + $0x20] sm:$0xff]
        %v1472 = vld [vmem:[#allocation13 + $0x28] sm:$0xff]
        %v1473 = vld [vmem:[#allocation13 + $0x30] sm:$0xff]
        %v1474 = vld [vmem:[#allocation13 + $0x38] sm:$0xff]
        %v1475 = vld [vmem:[#allocation13 + $0x40] sm:$0xff]
        %v1476 = vld [vmem:[#allocation13 + $0x48] sm:$0xff]
        %v1477 = vld [vmem:[#allocation13 + $0x50] sm:$0xff]
        %v1478 = vld [vmem:[#allocation13 + $0x58] sm:$0xff]
        %v1479 = vld [vmem:[#allocation13 + $0x60] sm:$0xff]
        %v1480 = vld [vmem:[#allocation13 + $0x68] sm:$0xff]
        %v1481 = vld [vmem:[#allocation13 + $0x70] sm:$0xff]
        %v1482 = vld [vmem:[#allocation13 + $0x78] sm:$0xff]
        %v1483 = vld [vmem:[#allocation13 + $0x80] sm:$0xff]
        %v1484 = vld [vmem:[#allocation13 + $0x88] sm:$0xff]
        %v1485 = vld [vmem:[#allocation13 + $0x90] sm:$0xff]
        %v1486 = vld [vmem:[#allocation13 + $0x98] sm:$0xff]
        %v1487 = vld [vmem:[#allocation13 + $0xa0] sm:$0xff]
        %v1488 = vld [vmem:[#allocation13 + $0xa8] sm:$0xff]
        %v1489 = vld [vmem:[#allocation13 + $0xb0] sm:$0xff]
        %v1490 = vld [vmem:[#allocation13 + $0xb8] sm:$0xff]
        %v1491 = vld [vmem:[#allocation13 + $0xc0] sm:$0xff]
        %v1492 = vld [vmem:[#allocation13 + $0xc8] sm:$0xff]
        %v1493 = vld [vmem:[#allocation13 + $0xd0] sm:$0xff]
        %v1494 = vld [vmem:[#allocation13 + $0xd8] sm:$0xff]
        %v1495 = vld [vmem:[#allocation13 + $0xe0] sm:$0xff]
        %v1496 = vld [vmem:[#allocation13 + $0xe8] sm:$0xff]
        %v1497 = vld [vmem:[#allocation13 + $0xf0] sm:$0xff]
        %v1498 = vld [vmem:[#allocation13 + $0xf8] sm:$0xff]
        %v1499 = vpack.c.bf16 %v1469, %v1467
        %v1500 = vpack.c.bf16 %v1470, %v1468
        %v1501 = vpack.c.bf16 %v1473, %v1471
        %v1502 = vpack.c.bf16 %v1474, %v1472
        %v1503 = vpack.c.bf16 %v1477, %v1475
        %v1504 = vpack.c.bf16 %v1478, %v1476
        %v1505 = vpack.c.bf16 %v1481, %v1479
        %v1506 = vpack.c.bf16 %v1482, %v1480
        %v1507 = vpack.c.bf16 %v1485, %v1483
        %v1508 = vpack.c.bf16 %v1486, %v1484
        %v1509 = vpack.c.bf16 %v1489, %v1487
        %v1510 = vpack.c.bf16 %v1490, %v1488
        %v1511 = vpack.c.bf16 %v1493, %v1491
        %v1512 = vpack.c.bf16 %v1494, %v1492
        %v1513 = vpack.c.bf16 %v1497, %v1495
        %v1514 = vpack.c.bf16 %v1498, %v1496
        %v1515 = vld [vmem:[%s11] sm:$0x3]
        %v1517 = vlaneseq
        %v1518 = vshrl.u32 %v1517, 7
        %v1519 = vsub.s32 0, %v1518
        %v1520 = vrot.slane %v1515, %v1519
        %v1521 = vlaneseq
        %v1522 = vshrl.u32 %v1521, 7
        %v1523 = vsub.s32 1, %v1522
        %v1524 = vrot.slane %v1515, %v1523
        %1527 = vmatprep.subr.bf16.mxu0 %v1514
        %1528 = vmatpush1.bf16.msra.mxu0 %v1513
        %1529 = vmatprep.subr.bf16.mxu0 %v1512
        %1530 = vmatpush1.bf16.msra.mxu0 %v1511
        %1531 = vmatprep.subr.bf16.mxu0 %v1510
        %1532 = vmatpush1.bf16.msra.mxu0 %v1509
        %1533 = vmatprep.subr.bf16.mxu0 %v1508
        %1534 = vmatpush1.bf16.msra.mxu0 %v1507
        %1535 = vmatprep.subr.bf16.mxu0 %v1506
        %1536 = vmatpush1.bf16.msra.mxu0 %v1505
        %1537 = vmatprep.subr.bf16.mxu0 %v1504
        %1538 = vmatpush1.bf16.msra.mxu0 %v1503
        %1539 = vmatprep.subr.bf16.mxu0 %v1502
        %1540 = vmatpush1.bf16.msra.mxu0 %v1501
        %1541 = vmatprep.subr.bf16.mxu0 %v1500
        %1542 = vmatpush1.bf16.msra.mxu0 %v1499
        %1543 = vmatprep.subr.bf16.mxu0 0
        %1544 = vmatpush2.bf16.msra.mxu0 0
        %1545 = vmatprep.subr.bf16.mxu0 0
        %1546 = vmatpush2.bf16.msra.mxu0 0
        %1547 = vmatprep.subr.bf16.mxu0 0
        %1548 = vmatpush2.bf16.msra.mxu0 0
        %1549 = vmatprep.subr.bf16.mxu0 0
        %1550 = vmatpush2.bf16.msra.mxu0 0
        %1551 = vmatprep.subr.bf16.mxu0 0
        %1552 = vmatpush2.bf16.msra.mxu0 0
        %1553 = vmatprep.subr.bf16.mxu0 0
        %1554 = vmatpush2.bf16.msra.mxu0 0
        %1555 = vmatprep.subr.bf16.mxu0 0
        %1556 = vmatpush2.bf16.msra.mxu0 0
        %1557 = vmatprep.subr.bf16.mxu0 0
        %1558 = vmatpush2.bf16.msra.mxu0 0
        %1559 = vmatprep.mubr.bf16.mxu0 0
        %1560 = vmatmul.mubr.bf16.gmra.mxu0 %v1466
        %v1561 = vpop.f32.mrf.mxu0
        %v1562 = vadd.f32 %v1520, %v1561
        %v1563 = vpop.f32.mrf.mxu0
        %v1564 = vadd.f32 %v1524, %v1563
        %v1565 = vpop.f32.mrf.mxu0
        %v1566 = vadd.f32 %v1520, %v1565
        %v1567 = vpop.f32.mrf.mxu0
        %v1568 = vadd.f32 %v1524, %v1567
        %1569 = vdwg.mxu0
        %v1570 = vmul.f32 %v1562, %v1562
        %v1571 = vmul.f32 %v1564, %v1564
        %v1572 = vmul.f32 %v1566, %v1566
        %v1573 = vmul.f32 %v1568, %v1568
        %v1574 = vmul.f32 %v1562, %v1570
        %v1575 = vmul.f32 %v1564, %v1571
        %v1576 = vmul.f32 %v1566, %v1572
        %v1577 = vmul.f32 %v1568, %v1573
        %v1578 = vmul.f32 %v1574, 0.044715
        %v1579 = vmul.f32 %v1575, 0.044715
        %v1580 = vmul.f32 %v1576, 0.044715
        %v1581 = vmul.f32 %v1577, 0.044715
        %v1582 = vadd.f32 %v1562, %v1578
        %v1583 = vadd.f32 %v1564, %v1579
        %v1584 = vadd.f32 %v1566, %v1580
        %v1585 = vadd.f32 %v1568, %v1581
        %v1586 = vmul.f32 %v1582, 0.7978846
        %v1587 = vmul.f32 %v1583, 0.7978846
        %v1588 = vmul.f32 %v1584, 0.7978846
        %v1589 = vmul.f32 %v1585, 0.7978846
        %v1590 = vtanh.pop %v1586
        %v1591 = vtanh.pop %v1587
        %v1592 = vtanh.pop %v1588
        %v1593 = vtanh.pop %v1589
        %v1594 = vadd.f32 %v1590, 1.0
        %v1595 = vadd.f32 %v1591, 1.0
        %v1596 = vadd.f32 %v1592, 1.0
        %v1597 = vadd.f32 %v1593, 1.0
        %v1598 = vmul.f32 %v1594, 0.5
        %v1599 = vmul.f32 %v1595, 0.5
        %v1600 = vmul.f32 %v1596, 0.5
        %v1601 = vmul.f32 %v1597, 0.5
        %v1602 = vmul.f32 %v1562, %v1598
        %v1603 = vmul.f32 %v1564, %v1599
        %v1604 = vmul.f32 %v1566, %v1600
        %v1605 = vmul.f32 %v1568, %v1601
        %v1606 = vpack.c.bf16 %v1604, %v1602
        %v1607 = vpack.c.bf16 %v1605, %v1603
        %v1608 = vld [vmem:[#allocation14] sm:$0xff]
        %v1609 = vld [vmem:[#allocation14 + $0x8] sm:$0xff]
        %v1610 = vld [vmem:[#allocation14 + $0x10] sm:$0xff]
        %v1611 = vld [vmem:[#allocation14 + $0x18] sm:$0xff]
        %v1612 = vld [vmem:[#allocation14 + $0x20] sm:$0xff]
        %v1613 = vld [vmem:[#allocation14 + $0x28] sm:$0xff]
        %v1614 = vld [vmem:[#allocation14 + $0x30] sm:$0xff]
        %v1615 = vld [vmem:[#allocation14 + $0x38] sm:$0xff]
        %v1616 = vld [vmem:[#allocation14 + $0x40] sm:$0xff]
        %v1617 = vld [vmem:[#allocation14 + $0x48] sm:$0xff]
        %v1618 = vld [vmem:[#allocation14 + $0x50] sm:$0xff]
        %v1619 = vld [vmem:[#allocation14 + $0x58] sm:$0xff]
        %v1620 = vld [vmem:[#allocation14 + $0x60] sm:$0xff]
        %v1621 = vld [vmem:[#allocation14 + $0x68] sm:$0xff]
        %v1622 = vld [vmem:[#allocation14 + $0x70] sm:$0xff]
        %v1623 = vld [vmem:[#allocation14 + $0x78] sm:$0xff]
        %v1624 = vld [vmem:[#allocation14 + $0x80] sm:$0xff]
        %v1625 = vld [vmem:[#allocation14 + $0x88] sm:$0xff]
        %v1626 = vld [vmem:[#allocation14 + $0x90] sm:$0xff]
        %v1627 = vld [vmem:[#allocation14 + $0x98] sm:$0xff]
        %v1628 = vld [vmem:[#allocation14 + $0xa0] sm:$0xff]
        %v1629 = vld [vmem:[#allocation14 + $0xa8] sm:$0xff]
        %v1630 = vld [vmem:[#allocation14 + $0xb0] sm:$0xff]
        %v1631 = vld [vmem:[#allocation14 + $0xb8] sm:$0xff]
        %v1632 = vld [vmem:[#allocation14 + $0xc0] sm:$0xff]
        %v1633 = vld [vmem:[#allocation14 + $0xc8] sm:$0xff]
        %v1634 = vld [vmem:[#allocation14 + $0xd0] sm:$0xff]
        %v1635 = vld [vmem:[#allocation14 + $0xd8] sm:$0xff]
        %v1636 = vld [vmem:[#allocation14 + $0xe0] sm:$0xff]
        %v1637 = vld [vmem:[#allocation14 + $0xe8] sm:$0xff]
        %v1638 = vld [vmem:[#allocation14 + $0xf0] sm:$0xff]
        %v1639 = vld [vmem:[#allocation14 + $0xf8] sm:$0xff]
        %v1640 = vpack.c.bf16 %v1609, %v1608
        %v1641 = vpack.c.bf16 %v1611, %v1610
        %v1642 = vpack.c.bf16 %v1613, %v1612
        %v1643 = vpack.c.bf16 %v1615, %v1614
        %v1644 = vpack.c.bf16 %v1617, %v1616
        %v1645 = vpack.c.bf16 %v1619, %v1618
        %v1646 = vpack.c.bf16 %v1621, %v1620
        %v1647 = vpack.c.bf16 %v1623, %v1622
        %v1648 = vpack.c.bf16 %v1625, %v1624
        %v1649 = vpack.c.bf16 %v1627, %v1626
        %v1650 = vpack.c.bf16 %v1629, %v1628
        %v1651 = vpack.c.bf16 %v1631, %v1630
        %v1652 = vpack.c.bf16 %v1633, %v1632
        %v1653 = vpack.c.bf16 %v1635, %v1634
        %v1654 = vpack.c.bf16 %v1637, %v1636
        %v1655 = vpack.c.bf16 %v1639, %v1638
        %v1656 = vld [vmem:[%s13] sm:$0x1]
        %v1658 = vlaneseq
        %v1659 = vshrl.u32 %v1658, 7
        %v1660 = vsub.s32 0, %v1659
        %v1661 = vrot.slane %v1656, %v1660
        %1663 = vmatprep.subr.bf16.mxu0 0
        %1664 = vmatpush1.bf16.msra.mxu0 %v1647
        %1665 = vmatprep.subr.bf16.mxu0 0
        %1666 = vmatpush1.bf16.msra.mxu0 %v1646
        %1667 = vmatprep.subr.bf16.mxu0 0
        %1668 = vmatpush1.bf16.msra.mxu0 %v1645
        %1669 = vmatprep.subr.bf16.mxu0 0
        %1670 = vmatpush1.bf16.msra.mxu0 %v1644
        %1671 = vmatprep.subr.bf16.mxu0 0
        %1672 = vmatpush1.bf16.msra.mxu0 %v1643
        %1673 = vmatprep.subr.bf16.mxu0 0
        %1674 = vmatpush1.bf16.msra.mxu0 %v1642
        %1675 = vmatprep.subr.bf16.mxu0 0
        %1676 = vmatpush1.bf16.msra.mxu0 %v1641
        %1677 = vmatprep.subr.bf16.mxu0 0
        %1678 = vmatpush1.bf16.msra.mxu0 %v1640
        %1679 = vmatprep.subr.bf16.mxu0 0
        %1680 = vmatpush2.bf16.msra.mxu0 %v1655
        %1681 = vmatprep.subr.bf16.mxu0 0
        %1682 = vmatpush2.bf16.msra.mxu0 %v1654
        %1683 = vmatprep.subr.bf16.mxu0 0
        %1684 = vmatpush2.bf16.msra.mxu0 %v1653
        %1685 = vmatprep.subr.bf16.mxu0 0
        %1686 = vmatpush2.bf16.msra.mxu0 %v1652
        %1687 = vmatprep.subr.bf16.mxu0 0
        %1688 = vmatpush2.bf16.msra.mxu0 %v1651
        %1689 = vmatprep.subr.bf16.mxu0 0
        %1690 = vmatpush2.bf16.msra.mxu0 %v1650
        %1691 = vmatprep.subr.bf16.mxu0 0
        %1692 = vmatpush2.bf16.msra.mxu0 %v1649
        %1693 = vmatprep.subr.bf16.mxu0 0
        %1694 = vmatpush2.bf16.msra.mxu0 %v1648
        %1695 = vmatprep.mubr.bf16.mxu0 %v1607
        %1696 = vmatmul.mubr.bf16.gmra.mxu0 %v1606
        %v1697 = vpop.f32.mrf.mxu0
        %v1698 = vadd.f32 %v1661, %v1697
        %v1699 = vpop.f32.mrf.mxu0
        %v1700 = vpop.f32.mrf.mxu0
        %v1701 = vadd.f32 %v1661, %v1700
        %v1702 = vpop.f32.mrf.mxu0
        %1703 = vdwg.mxu0
        %v1704 = vadd.f32 %v1698, %v1424
        %v1705 = vadd.f32 %v1701, %v1425
        %1706 = vst [vmem:[%s585] sm:$0xff] %v1704
        %1707 = vst [vmem:[%s585 + $0x8] sm:$0xff] %v1705
        %s1708 = sand.u32 %s342, 1
        %s1709 = scalar_lea.sflag [#allocation4], %s1708
        %s1710 = sand.u32 %s342, 1
        %s1711 = smul.addr %s1710, 16
        %s1712 = scalar_lea.vmem [#allocation16], %s1711
        // Predicated region
        $region109: #{tpu_custom_call.1} parent=75 // pred_check
          %p1713 = pneg %p352
        $region110: #{tpu_custom_call.1} parent=75 // pred_check_branch
          %1715 = sbr.rel (%p1713) target = $region112
        $region111: #{tpu_custom_call.1} parent=75 // pred_region
          %s1717 = ssub.s32 256, 256
          %1718 = vsyncadd %s1709, %s1717
          %s1719 = smul.addr %s35, 2
          %s1720 = smul.addr %s1719, 128
          %s1721 = scalar_lea.hbm %s14, %s1720
          %s1722 = sshll.u32 %s1712, 4
          %s1723 = int_to_ptr.vmem [resolvable:$true] %s1722
          %1728 = dma.vmem_to_hbm [thread:$0]  %s1723, 256, %s1721, %s1709, 128, 128, 8
        $region112: #{tpu_custom_call.1} parent=75 // pred_fallthru
          _
      $region76: #{tpu_custom_call.1} parent=5 // pred_fallthru
        _
      %p1729 = scmp.le.s32.totalorder 2, %s30
      // Predicated region
      $region113: #{tpu_custom_call.1} parent=5 // pred_check
        %p1730 = pneg %p1729
      $region114: #{tpu_custom_call.1} parent=5 // pred_check_branch
        %1732 = sbr.rel (%p1730) target = $region116
      $region115: #{tpu_custom_call.1} parent=5 // pred_region
        %s1733 = ssub.s32 %s30, 2
        // Predicated region
        $region117: #{tpu_custom_call.1} parent=115 // pred_check
          %p1734 = pneg %p358
        $region118: #{tpu_custom_call.1} parent=115 // pred_check_branch
          %1736 = sbr.rel (%p1734) target = $region120
        $region119: #{tpu_custom_call.1} parent=115 // pred_region
          %s1737 = sand.u32 %s343, 1
          %s1738 = scalar_lea.sflag [#allocation4], %s1737
          %s1739 = sand.u32 %s343, 1
          %s1740 = smul.addr %s1739, 16
          %s1741 = scalar_lea.vmem [#allocation16], %s1740
          %1742 = dma.done %s1738, 256
        $region120: #{tpu_custom_call.1} parent=115 // pred_fallthru
          _
      $region116: #{tpu_custom_call.1} parent=5 // pred_fallthru
        _
    $region6: #{tpu_custom_call.1} parent=1 // loop_footer
      %s34 = sadd.s32 1, %s30
    $region7: #{tpu_custom_call.1} parent=1 // loop_footer_branch
      %29 = sbr.rel target = $region3
    $region8: #{tpu_custom_call.1} parent=1 // loop_exit
      _
    %1743 = vsyncpa [#allocation3], 1
    %s1744 = scalar_lea.sflag [#allocation3], 1
    %1745 = vsyncpa %s1744, 1
    %1746 = vsyncpa [#allocation6], 1
    %1747 = vsyncpa [#allocation9], 1
    %1748 = vsyncpa [#allocation12], 1
    %1749 = vsyncpa [#allocation15], 1
    %1750 = vsyncpa [#allocation4], 1
    %s1751 = scalar_lea.sflag [#allocation4], 1
    %1752 = vsyncpa %s1751, 1

</llo_original>
